<compile_context>
chip_gen: v5e
topology: v5e:2x2
jax: 0.10.0
libtpu: 0.0.40
codegen_flags: <defaults>
</compile_context>

<pallas_src>
import functools

import jax
import jax.numpy as jnp
from jax import lax
from jax.experimental import pallas as pl
from jax.experimental.pallas import tpu as pltpu


_VMEM_LIMIT = 32 * 1024 * 1024  # explicit scoped-VMEM budget (safe on v5e/v6e/v7x)


def _default_2d_filter(channels: int) -> jnp.ndarray:
    f = jnp.array([[1.0, 2.0, 1.0],
                   [2.0, 4.0, 2.0],
                   [1.0, 2.0, 1.0]], dtype=jnp.float32) / 16.0
    return jnp.tile(f[None, None], (channels, 1, 1, 1))  # (C, 1, 3, 3)


# ----------------------------- blur (depthwise) kernel -----------------------------
def _blur_kernel(x_ref, o_ref):
    # x_ref: (bn, H+2, W+2, C) NHWC block; o_ref: (bn, H, W, C)
    # Composer's default filter is separable: [1,2,1]/4 (outer) [1,2,1]/4.
    H = o_ref.shape[1]
    W = o_ref.shape[2]
    x = x_ref[...].astype(jnp.float32)
    # Horizontal pass: sublane shifts along W (lanes carry C -> no lane rotates).
    h = 0.25 * x[:, :, 0:W, :] + 0.5 * x[:, :, 1:W + 1, :] + 0.25 * x[:, :, 2:W + 2, :]
    # Vertical pass: outer-dim shifts along H.
    v = 0.25 * h[:, 0:H, :, :] + 0.5 * h[:, 1:H + 1, :, :] + 0.25 * h[:, 2:H + 2, :, :]
    o_ref[...] = v.astype(o_ref.dtype)


def blur_2d_pallas(x_nhwc):
    """Depthwise default 3x3 blur, stride 1, same padding. x_nhwc: (N, H, W, C)."""
    N, H, W, C = x_nhwc.shape
    xp = jnp.pad(x_nhwc, ((0, 0), (1, 1), (1, 1), (0, 0)))
    Hp, Wp = H + 2, W + 2

    # Block whole images; keep >= 2 grid steps when possible so both
    # TensorCores get work on v7x.
    blk_bytes = Hp * Wp * C * x_nhwc.dtype.itemsize
    bn = max(1, min(N, (4 * 1024 * 1024) // max(blk_bytes, 1)))
    if bn >= N and N > 1:
        bn = pl.cdiv(N, 2)
    grid = (pl.cdiv(N, bn),)

    return pl.pallas_call(
        _blur_kernel,
        out_shape=jax.ShapeDtypeStruct((N, H, W, C), x_nhwc.dtype),
        grid=grid,
        in_specs=[pl.BlockSpec((bn, Hp, Wp, C), lambda i: (i, 0, 0, 0))],
        out_specs=pl.BlockSpec((bn, H, W, C), lambda i: (i, 0, 0, 0)),
        compiler_params=pltpu.CompilerParams(
            dimension_semantics=("parallel",),
            vmem_limit_bytes=_VMEM_LIMIT),
    )(xp)


# ----------------------------- conv (direct, polyphase input) -----------------------------
def _conv_phase_kernel(ph_ref, w_ref, b_ref, o_ref, *, K, s, Ho, Wo):
    # ph_ref: (bn, s, s, Hq, Wq, Cin) polyphase view of the conv-padded input,
    #         phases[n, a, b, u, v, c] == padded[n, u*s + a, v*s + b, c]
    # w_ref : (K, K, Cin, Coutp) bf16 ; b_ref: (1, Coutp) f32
    # o_ref : (bn*Ho*Wo, Coutp) f32
    bn = ph_ref.shape[0]
    Cin = ph_ref.shape[-1]
    Coutp = o_ref.shape[-1]
    M = bn * Ho * Wo

    ph = ph_ref[...]          # single contiguous load; all tap access is vreg slicing
    w = w_ref[...]            # (K, K, Cin, Coutp) bf16, resident across grid steps
    acc = jnp.zeros((M, Coutp), jnp.float32)

    # Direct conv: out[n,i,j] += padded[n, i*s+kh, j*s+kw] @ w[kh,kw].
    # With kh = qh*s + ah, that tap is the contiguous window
    # phases[:, ah, aw, qh:qh+Ho, qw:qw+Wo, :]  (no strided access needed).
    for kh in range(K):
        ah, qh = kh % s, kh // s
        for kw in range(K):
            aw, qw = kw % s, kw // s
            patch = ph[:, ah, aw, qh:qh + Ho, qw:qw + Wo, :]        # (bn, Ho, Wo, Cin)
            lhs = patch.reshape(M, Cin).astype(jnp.bfloat16)        # lane dim unchanged
            acc = acc + jnp.dot(lhs, w[kh, kw],
                                preferred_element_type=jnp.float32)

    o_ref[...] = (acc + b_ref[...]).astype(o_ref.dtype)


def conv2d_pallas(x_nhwc, weight, bias, stride, padding):
    """Conv2d (groups=1, dilation=1). x_nhwc: (N,H,W,Cin); weight: (Cout,Cin,K,K).
    Returns NCHW output (matching the torch module)."""
    N, H, W, Cin = x_nhwc.shape
    Cout, _, K, _ = weight.shape
    s, p = int(stride), int(padding)
    Ho = (H + 2 * p - K) // s + 1
    Wo = (W + 2 * p - K) // s + 1
    Hc, Wc = H + 2 * p, W + 2 * p
    Hq, Wq = pl.cdiv(Hc, s), pl.cdiv(Wc, s)

    # Polyphase (space-to-depth) view of the conv-padded input built by XLA.
    # This is a 1x-sized relayout (vs. the 9x im2col matrix it replaces) and it
    # makes every in-kernel tap a contiguous slice.
    padded = jnp.pad(x_nhwc,
                     ((0, 0), (p, p + Hq * s - Hc), (p, p + Wq * s - Wc), (0, 0)))
    phases = padded.reshape(N, Hq, s, Wq, s, Cin).transpose(0, 2, 4, 1, 3, 5)

    # Weight -> (kh, kw, ci, co); pad Cout to a 128-lane multiple so the output
    # lane dim is dense; bf16 MXU operands, f32 accumulation.
    Coutp = ((Cout + 127) // 128) * 128
    w = weight.transpose(2, 3, 1, 0)                                 # (K,K,Cin,Cout)
    w = jnp.pad(w, ((0, 0), (0, 0), (0, 0), (0, Coutp - Cout))).astype(jnp.bfloat16)
    if bias is None:
        bias = jnp.zeros((Cout,), jnp.float32)
    b_row = jnp.pad(bias.astype(jnp.float32), (0, Coutp - Cout)).reshape(1, Coutp)

    rows = Ho * Wo
    blk_bytes = s * s * Hq * Wq * Cin * 4
    bn = max(1, min(N, (4 * 1024 * 1024) // max(blk_bytes, 1)))
    if bn >= N and N > 1:
        bn = pl.cdiv(N, 2)          # keep >= 2 parallel steps (v7x: 2 TCs)
    if (bn * rows) % 8 != 0:
        bn = N                      # fall back to one full block (8-aligned stores)
    grid = (pl.cdiv(N, bn),)

    kern = functools.partial(_conv_phase_kernel, K=K, s=s, Ho=Ho, Wo=Wo)
    out2d = pl.pallas_call(
        kern,
        out_shape=jax.ShapeDtypeStruct((N * rows, Coutp), jnp.float32),
        grid=grid,
        in_specs=[
            pl.BlockSpec((bn, s, s, Hq, Wq, Cin), lambda i: (i, 0, 0, 0, 0, 0)),
            pl.BlockSpec((K, K, Cin, Coutp), lambda i: (0, 0, 0, 0)),
            pl.BlockSpec((1, Coutp), lambda i: (0, 0)),
        ],
        out_specs=pl.BlockSpec((bn * rows, Coutp), lambda i: (i, 0)),
        compiler_params=pltpu.CompilerParams(
            dimension_semantics=("parallel",),
            vmem_limit_bytes=_VMEM_LIMIT),
    )(phases, w, b_row)

    out = out2d[:, :Cout].reshape(N, Ho, Wo, Cout)
    return out.transpose(0, 3, 1, 2)                                 # (N, Cout, Ho, Wo)


# ----------------------------- BlurConv2d module -----------------------------
class BlurConv2dPallas:
    """Pallas equivalent of composer's BlurConv2d (blur_first=True, groups=1, dilation=1)."""

    def __init__(self, in_channels, out_channels, kernel_size, stride, padding=0,
                 bias=True, blur_first=True, *, key):
        assert blur_first and stride is not None  # module asserts stride when blur_first
        # TODO(synk): blur_first=False path (conv stride 1 then strided blur) not exercised.
        self.in_channels = in_channels
        self.out_channels = out_channels
        self.kernel_size = kernel_size
        self.stride = stride
        self.padding = padding
        # Buffer kept for parity with the torch module / reference; the Pallas
        # blur bakes the (separable) default taps as constants.
        self.blur_filter = _default_2d_filter(in_channels)       # (Cin, 1, 3, 3)
        kw, kb = jax.random.split(key)
        fan_in = in_channels * kernel_size * kernel_size
        bound = 1.0 / (fan_in ** 0.5)
        self.weight = jax.random.uniform(
            kw, (out_channels, in_channels, kernel_size, kernel_size),
            jnp.float32, -bound, bound)
        self.bias = (jax.random.uniform(kb, (out_channels,), jnp.float32, -bound, bound)
                     if bias else None)

    def __call__(self, x):                        # x: (N, Cin, H, W)
        x_nhwc = jnp.transpose(x, (0, 2, 3, 1))   # lane-dense channels-last layout
        blurred = blur_2d_pallas(x_nhwc)          # blur stride 1 (blur_first=True)
        return conv2d_pallas(blurred, self.weight, self.bias,
                             self.stride, self.padding)


# ----------------------------- reference (plain JAX) -----------------------------
def _reference(x, mod: BlurConv2dPallas):
    dn = ("NCHW", "OIHW", "NCHW")
    blurred = lax.conv_general_dilated(
        x, mod.blur_filter, (1, 1), ((1, 1), (1, 1)),
        dimension_numbers=dn, feature_group_count=mod.in_channels,
        precision=lax.Precision.HIGHEST)
    out = lax.conv_general_dilated(
        blurred, mod.weight, (mod.stride, mod.stride),
        ((mod.padding, mod.padding),) * 2,
        dimension_numbers=dn, precision=lax.Precision.HIGHEST)
    if mod.bias is not None:
        out = out + mod.bias[None, :, None, None]
    return out


if __name__ == "__main__":
    key = jax.random.PRNGKey(0)
    kx, kp = jax.random.split(key)

    N, Cin, H, W = 2, 4, 16, 16
    Cout, K, stride, padding = 8, 3, 2, 1

    x = jax.random.normal(kx, (N, Cin, H, W), jnp.float32)
    mod = BlurConv2dPallas(Cin, Cout, K, stride=stride, padding=padding,
                           bias=True, blur_first=True, key=kp)

    fwd = jax.jit(lambda inp: mod(inp))
    out = jax.block_until_ready(fwd(x))

    ref = _reference(x, mod)
    assert out.shape == (N, Cout, H // stride, W // stride), out.shape
    # Tolerance accounts for bf16 MXU operands (f32 accumulation) in the conv.
    assert jnp.allclose(out, ref, atol=2e-2, rtol=2e-2), "mismatch vs reference conv"

    print("KERNEL_OK")
</pallas_src>

<mosaic_0001>
module attributes {stable_mosaic.version = 11 : i64} {
  func.func @_blur_kernel(%arg0: i32, %arg1: memref<1x18x18x4xf32, #tpu.memory_space<vmem>>, %arg2: memref<1x16x16x4xf32, #tpu.memory_space<vmem>>) attributes {dimension_semantics = [#tpu.dimension_semantics<parallel>], iteration_bounds = array<i64: 2>, scalar_prefetch = 0 : i64, scratch_operands = 0 : i64, tpu.core_type = #tpu.core_type<tc>, window_params = [{transform_indices = @transform_0, window_bounds = array<i64: 1, 18, 18, 4>}, {transform_indices = @transform_1, window_bounds = array<i64: 1, 16, 16, 4>}]} {
    %c0 = arith.constant 0 : index
    %c0_0 = arith.constant 0 : index
    %c0_1 = arith.constant 0 : index
    %c0_2 = arith.constant 0 : index
    %0 = vector.load %arg1[%c0, %c0_0, %c0_1, %c0_2] : memref<1x18x18x4xf32, #tpu.memory_space<vmem>>, vector<1x18x18x4xf32>
    %1 = vector.extract_strided_slice %0 {offsets = [0, 0, 0, 0], sizes = [1, 18, 16, 4], strides = [1, 1, 1, 1]} : vector<1x18x18x4xf32> to vector<1x18x16x4xf32>
    %cst = arith.constant 2.500000e-01 : f32
    %2 = vector.broadcast %cst : f32 to vector<1x18x16x4xf32>
    %3 = arith.mulf %2, %1 : vector<1x18x16x4xf32>
    %4 = vector.extract_strided_slice %0 {offsets = [0, 0, 1, 0], sizes = [1, 18, 16, 4], strides = [1, 1, 1, 1]} : vector<1x18x18x4xf32> to vector<1x18x16x4xf32>
    %cst_3 = arith.constant 5.000000e-01 : f32
    %5 = vector.broadcast %cst_3 : f32 to vector<1x18x16x4xf32>
    %6 = arith.mulf %5, %4 : vector<1x18x16x4xf32>
    %7 = arith.addf %3, %6 : vector<1x18x16x4xf32>
    %8 = vector.extract_strided_slice %0 {offsets = [0, 0, 2, 0], sizes = [1, 18, 16, 4], strides = [1, 1, 1, 1]} : vector<1x18x18x4xf32> to vector<1x18x16x4xf32>
    %cst_4 = arith.constant 2.500000e-01 : f32
    %9 = vector.broadcast %cst_4 : f32 to vector<1x18x16x4xf32>
    %10 = arith.mulf %9, %8 : vector<1x18x16x4xf32>
    %11 = arith.addf %7, %10 : vector<1x18x16x4xf32>
    %12 = vector.extract_strided_slice %11 {offsets = [0, 0, 0, 0], sizes = [1, 16, 16, 4], strides = [1, 1, 1, 1]} : vector<1x18x16x4xf32> to vector<1x16x16x4xf32>
    %cst_5 = arith.constant 2.500000e-01 : f32
    %13 = vector.broadcast %cst_5 : f32 to vector<1x16x16x4xf32>
    %14 = arith.mulf %13, %12 : vector<1x16x16x4xf32>
    %15 = vector.extract_strided_slice %11 {offsets = [0, 1, 0, 0], sizes = [1, 16, 16, 4], strides = [1, 1, 1, 1]} : vector<1x18x16x4xf32> to vector<1x16x16x4xf32>
    %cst_6 = arith.constant 5.000000e-01 : f32
    %16 = vector.broadcast %cst_6 : f32 to vector<1x16x16x4xf32>
    %17 = arith.mulf %16, %15 : vector<1x16x16x4xf32>
    %18 = arith.addf %14, %17 : vector<1x16x16x4xf32>
    %19 = vector.extract_strided_slice %11 {offsets = [0, 2, 0, 0], sizes = [1, 16, 16, 4], strides = [1, 1, 1, 1]} : vector<1x18x16x4xf32> to vector<1x16x16x4xf32>
    %cst_7 = arith.constant 2.500000e-01 : f32
    %20 = vector.broadcast %cst_7 : f32 to vector<1x16x16x4xf32>
    %21 = arith.mulf %20, %19 : vector<1x16x16x4xf32>
    %22 = arith.addf %18, %21 : vector<1x16x16x4xf32>
    %c0_8 = arith.constant 0 : index
    %c0_9 = arith.constant 0 : index
    %c0_10 = arith.constant 0 : index
    %c0_11 = arith.constant 0 : index
    %23 = vector.load %arg2[%c0_8, %c0_9, %c0_10, %c0_11] : memref<1x16x16x4xf32, #tpu.memory_space<vmem>>, vector<1x16x16x4xf32>
    tpu.vector_store %arg2[%c0_8, %c0_9, %c0_10, %c0_11], %22 {strides = array<i32>} : memref<1x16x16x4xf32, #tpu.memory_space<vmem>>, vector<1x16x16x4xf32>,
    return
  }
  func.func @transform_0(%arg0: i32) -> (i32, i32, i32, i32) {
    %c0_i32 = arith.constant 0 : i32
    %c0_i32_0 = arith.constant 0 : i32
    %c0_i32_1 = arith.constant 0 : i32
    %c0_i32_2 = arith.constant 0 : i32
    return %arg0, %c0_i32, %c0_i32_0, %c0_i32_1 : i32, i32, i32, i32
  }
  func.func @transform_1(%arg0: i32) -> (i32, i32, i32, i32) {
    %c0_i32 = arith.constant 0 : i32
    %c0_i32_0 = arith.constant 0 : i32
    %c0_i32_1 = arith.constant 0 : i32
    %c0_i32_2 = arith.constant 0 : i32
    return %arg0, %c0_i32, %c0_i32_0, %c0_i32_1 : i32, i32, i32, i32
  }
}

module attributes {stable_mosaic.version = 11 : i64} {
  func.func @_conv_phase_kernel(%arg0: i32, %arg1: memref<1x2x2x9x9x4xf32, #tpu.memory_space<vmem>>, %arg2: memref<3x3x4x128xbf16, #tpu.memory_space<vmem>>, %arg3: memref<1x128xf32, #tpu.memory_space<vmem>>, %arg4: memref<64x128xf32, #tpu.memory_space<vmem>>) attributes {dimension_semantics = [#tpu.dimension_semantics<parallel>], iteration_bounds = array<i64: 2>, scalar_prefetch = 0 : i64, scratch_operands = 0 : i64, tpu.core_type = #tpu.core_type<tc>, window_params = [{transform_indices = @transform_0, window_bounds = array<i64: 1, 2, 2, 9, 9, 4>}, {pipeline_mode = #tpu.pipeline_mode<synchronous>, transform_indices = @transform_1, window_bounds = array<i64: 3, 3, 4, 128>}, {pipeline_mode = #tpu.pipeline_mode<synchronous>, transform_indices = @transform_2, window_bounds = array<i64: 1, 128>}, {transform_indices = @transform_3, window_bounds = array<i64: 64, 128>}]} {
    %c0 = arith.constant 0 : index
    %c0_0 = arith.constant 0 : index
    %c0_1 = arith.constant 0 : index
    %c0_2 = arith.constant 0 : index
    %c0_3 = arith.constant 0 : index
    %c0_4 = arith.constant 0 : index
    %0 = vector.load %arg1[%c0, %c0_0, %c0_1, %c0_2, %c0_3, %c0_4] : memref<1x2x2x9x9x4xf32, #tpu.memory_space<vmem>>, vector<1x2x2x9x9x4xf32>
    %c0_5 = arith.constant 0 : index
    %c0_6 = arith.constant 0 : index
    %c0_7 = arith.constant 0 : index
    %c0_8 = arith.constant 0 : index
    %1 = vector.load %arg2[%c0_5, %c0_6, %c0_7, %c0_8] : memref<3x3x4x128xbf16, #tpu.memory_space<vmem>>, vector<3x3x4x128xbf16>
    %cst = arith.constant 0.000000e+00 : f32
    %2 = vector.broadcast %cst : f32 to vector<64x128xf32>
    %3 = vector.extract_strided_slice %0 {offsets = [0, 0, 0, 0, 0, 0], sizes = [1, 1, 1, 8, 8, 4], strides = [1, 1, 1, 1, 1, 1]} : vector<1x2x2x9x9x4xf32> to vector<1x1x1x8x8x4xf32>
    %4 = vector.shape_cast %3 : vector<1x1x1x8x8x4xf32> to vector<1x8x8x4xf32>
    %5 = vector.shape_cast %4 : vector<1x8x8x4xf32> to vector<64x4xf32>
    %6 = arith.truncf %5 : vector<64x4xf32> to vector<64x4xbf16>
    %7 = vector.extract_strided_slice %1 {offsets = [0, 0, 0, 0], sizes = [1, 1, 4, 128], strides = [1, 1, 1, 1]} : vector<3x3x4x128xbf16> to vector<1x1x4x128xbf16>
    %8 = vector.shape_cast %7 : vector<1x1x4x128xbf16> to vector<4x128xbf16>
    %cst_9 = arith.constant dense<0.000000e+00> : vector<64x128xf32>
    %9 = tpu.matmul %6, %8, %cst_9 {dimension_numbers = #tpu.dot_dimension_numbers<[1], [0], [0], [1], [0, 0, 1, 1], [], []>} : vector<64x4xbf16>, vector<4x128xbf16>, vector<64x128xf32> -> vector<64x128xf32>
    %10 = arith.addf %2, %9 : vector<64x128xf32>
    %11 = vector.extract_strided_slice %0 {offsets = [0, 0, 1, 0, 0, 0], sizes = [1, 1, 1, 8, 8, 4], strides = [1, 1, 1, 1, 1, 1]} : vector<1x2x2x9x9x4xf32> to vector<1x1x1x8x8x4xf32>
    %12 = vector.shape_cast %11 : vector<1x1x1x8x8x4xf32> to vector<1x8x8x4xf32>
    %13 = vector.shape_cast %12 : vector<1x8x8x4xf32> to vector<64x4xf32>
    %14 = arith.truncf %13 : vector<64x4xf32> to vector<64x4xbf16>
    %15 = vector.extract_strided_slice %1 {offsets = [0, 1, 0, 0], sizes = [1, 1, 4, 128], strides = [1, 1, 1, 1]} : vector<3x3x4x128xbf16> to vector<1x1x4x128xbf16>
    %16 = vector.shape_cast %15 : vector<1x1x4x128xbf16> to vector<4x128xbf16>
    %cst_10 = arith.constant dense<0.000000e+00> : vector<64x128xf32>
    %17 = tpu.matmul %14, %16, %cst_10 {dimension_numbers = #tpu.dot_dimension_numbers<[1], [0], [0], [1], [0, 0, 1, 1], [], []>} : vector<64x4xbf16>, vector<4x128xbf16>, vector<64x128xf32> -> vector<64x128xf32>
    %18 = arith.addf %10, %17 : vector<64x128xf32>
    %19 = vector.extract_strided_slice %0 {offsets = [0, 0, 0, 0, 1, 0], sizes = [1, 1, 1, 8, 8, 4], strides = [1, 1, 1, 1, 1, 1]} : vector<1x2x2x9x9x4xf32> to vector<1x1x1x8x8x4xf32>
    %20 = vector.shape_cast %19 : vector<1x1x1x8x8x4xf32> to vector<1x8x8x4xf32>
    %21 = vector.shape_cast %20 : vector<1x8x8x4xf32> to vector<64x4xf32>
    %22 = arith.truncf %21 : vector<64x4xf32> to vector<64x4xbf16>
    %23 = vector.extract_strided_slice %1 {offsets = [0, 2, 0, 0], sizes = [1, 1, 4, 128], strides = [1, 1, 1, 1]} : vector<3x3x4x128xbf16> to vector<1x1x4x128xbf16>
    %24 = vector.shape_cast %23 : vector<1x1x4x128xbf16> to vector<4x128xbf16>
    %cst_11 = arith.constant dense<0.000000e+00> : vector<64x128xf32>
    %25 = tpu.matmul %22, %24, %cst_11 {dimension_numbers = #tpu.dot_dimension_numbers<[1], [0], [0], [1], [0, 0, 1, 1], [], []>} : vector<64x4xbf16>, vector<4x128xbf16>, vector<64x128xf32> -> vector<64x128xf32>
    %26 = arith.addf %18, %25 : vector<64x128xf32>
    %27 = vector.extract_strided_slice %0 {offsets = [0, 1, 0, 0, 0, 0], sizes = [1, 1, 1, 8, 8, 4], strides = [1, 1, 1, 1, 1, 1]} : vector<1x2x2x9x9x4xf32> to vector<1x1x1x8x8x4xf32>
    %28 = vector.shape_cast %27 : vector<1x1x1x8x8x4xf32> to vector<1x8x8x4xf32>
    %29 = vector.shape_cast %28 : vector<1x8x8x4xf32> to vector<64x4xf32>
    %30 = arith.truncf %29 : vector<64x4xf32> to vector<64x4xbf16>
    %31 = vector.extract_strided_slice %1 {offsets = [1, 0, 0, 0], sizes = [1, 1, 4, 128], strides = [1, 1, 1, 1]} : vector<3x3x4x128xbf16> to vector<1x1x4x128xbf16>
    %32 = vector.shape_cast %31 : vector<1x1x4x128xbf16> to vector<4x128xbf16>
    %cst_12 = arith.constant dense<0.000000e+00> : vector<64x128xf32>
    %33 = tpu.matmul %30, %32, %cst_12 {dimension_numbers = #tpu.dot_dimension_numbers<[1], [0], [0], [1], [0, 0, 1, 1], [], []>} : vector<64x4xbf16>, vector<4x128xbf16>, vector<64x128xf32> -> vector<64x128xf32>
    %34 = arith.addf %26, %33 : vector<64x128xf32>
    %35 = vector.extract_strided_slice %0 {offsets = [0, 1, 1, 0, 0, 0], sizes = [1, 1, 1, 8, 8, 4], strides = [1, 1, 1, 1, 1, 1]} : vector<1x2x2x9x9x4xf32> to vector<1x1x1x8x8x4xf32>
    %36 = vector.shape_cast %35 : vector<1x1x1x8x8x4xf32> to vector<1x8x8x4xf32>
    %37 = vector.shape_cast %36 : vector<1x8x8x4xf32> to vector<64x4xf32>
    %38 = arith.truncf %37 : vector<64x4xf32> to vector<64x4xbf16>
    %39 = vector.extract_strided_slice %1 {offsets = [1, 1, 0, 0], sizes = [1, 1, 4, 128], strides = [1, 1, 1, 1]} : vector<3x3x4x128xbf16> to vector<1x1x4x128xbf16>
    %40 = vector.shape_cast %39 : vector<1x1x4x128xbf16> to vector<4x128xbf16>
    %cst_13 = arith.constant dense<0.000000e+00> : vector<64x128xf32>
    %41 = tpu.matmul %38, %40, %cst_13 {dimension_numbers = #tpu.dot_dimension_numbers<[1], [0], [0], [1], [0, 0, 1, 1], [], []>} : vector<64x4xbf16>, vector<4x128xbf16>, vector<64x128xf32> -> vector<64x128xf32>
    %42 = arith.addf %34, %41 : vector<64x128xf32>
    %43 = vector.extract_strided_slice %0 {offsets = [0, 1, 0, 0, 1, 0], sizes = [1, 1, 1, 8, 8, 4], strides = [1, 1, 1, 1, 1, 1]} : vector<1x2x2x9x9x4xf32> to vector<1x1x1x8x8x4xf32>
    %44 = vector.shape_cast %43 : vector<1x1x1x8x8x4xf32> to vector<1x8x8x4xf32>
    %45 = vector.shape_cast %44 : vector<1x8x8x4xf32> to vector<64x4xf32>
    %46 = arith.truncf %45 : vector<64x4xf32> to vector<64x4xbf16>
    %47 = vector.extract_strided_slice %1 {offsets = [1, 2, 0, 0], sizes = [1, 1, 4, 128], strides = [1, 1, 1, 1]} : vector<3x3x4x128xbf16> to vector<1x1x4x128xbf16>
    %48 = vector.shape_cast %47 : vector<1x1x4x128xbf16> to vector<4x128xbf16>
    %cst_14 = arith.constant dense<0.000000e+00> : vector<64x128xf32>
    %49 = tpu.matmul %46, %48, %cst_14 {dimension_numbers = #tpu.dot_dimension_numbers<[1], [0], [0], [1], [0, 0, 1, 1], [], []>} : vector<64x4xbf16>, vector<4x128xbf16>, vector<64x128xf32> -> vector<64x128xf32>
    %50 = arith.addf %42, %49 : vector<64x128xf32>
    %51 = vector.extract_strided_slice %0 {offsets = [0, 0, 0, 1, 0, 0], sizes = [1, 1, 1, 8, 8, 4], strides = [1, 1, 1, 1, 1, 1]} : vector<1x2x2x9x9x4xf32> to vector<1x1x1x8x8x4xf32>
    %52 = vector.shape_cast %51 : vector<1x1x1x8x8x4xf32> to vector<1x8x8x4xf32>
    %53 = vector.shape_cast %52 : vector<1x8x8x4xf32> to vector<64x4xf32>
    %54 = arith.truncf %53 : vector<64x4xf32> to vector<64x4xbf16>
    %55 = vector.extract_strided_slice %1 {offsets = [2, 0, 0, 0], sizes = [1, 1, 4, 128], strides = [1, 1, 1, 1]} : vector<3x3x4x128xbf16> to vector<1x1x4x128xbf16>
    %56 = vector.shape_cast %55 : vector<1x1x4x128xbf16> to vector<4x128xbf16>
    %cst_15 = arith.constant dense<0.000000e+00> : vector<64x128xf32>
    %57 = tpu.matmul %54, %56, %cst_15 {dimension_numbers = #tpu.dot_dimension_numbers<[1], [0], [0], [1], [0, 0, 1, 1], [], []>} : vector<64x4xbf16>, vector<4x128xbf16>, vector<64x128xf32> -> vector<64x128xf32>
    %58 = arith.addf %50, %57 : vector<64x128xf32>
    %59 = vector.extract_strided_slice %0 {offsets = [0, 0, 1, 1, 0, 0], sizes = [1, 1, 1, 8, 8, 4], strides = [1, 1, 1, 1, 1, 1]} : vector<1x2x2x9x9x4xf32> to vector<1x1x1x8x8x4xf32>
    %60 = vector.shape_cast %59 : vector<1x1x1x8x8x4xf32> to vector<1x8x8x4xf32>
    %61 = vector.shape_cast %60 : vector<1x8x8x4xf32> to vector<64x4xf32>
    %62 = arith.truncf %61 : vector<64x4xf32> to vector<64x4xbf16>
    %63 = vector.extract_strided_slice %1 {offsets = [2, 1, 0, 0], sizes = [1, 1, 4, 128], strides = [1, 1, 1, 1]} : vector<3x3x4x128xbf16> to vector<1x1x4x128xbf16>
    %64 = vector.shape_cast %63 : vector<1x1x4x128xbf16> to vector<4x128xbf16>
    %cst_16 = arith.constant dense<0.000000e+00> : vector<64x128xf32>
    %65 = tpu.matmul %62, %64, %cst_16 {dimension_numbers = #tpu.dot_dimension_numbers<[1], [0], [0], [1], [0, 0, 1, 1], [], []>} : vector<64x4xbf16>, vector<4x128xbf16>, vector<64x128xf32> -> vector<64x128xf32>
    %66 = arith.addf %58, %65 : vector<64x128xf32>
    %67 = vector.extract_strided_slice %0 {offsets = [0, 0, 0, 1, 1, 0], sizes = [1, 1, 1, 8, 8, 4], strides = [1, 1, 1, 1, 1, 1]} : vector<1x2x2x9x9x4xf32> to vector<1x1x1x8x8x4xf32>
    %68 = vector.shape_cast %67 : vector<1x1x1x8x8x4xf32> to vector<1x8x8x4xf32>
    %69 = vector.shape_cast %68 : vector<1x8x8x4xf32> to vector<64x4xf32>
    %70 = arith.truncf %69 : vector<64x4xf32> to vector<64x4xbf16>
    %71 = vector.extract_strided_slice %1 {offsets = [2, 2, 0, 0], sizes = [1, 1, 4, 128], strides = [1, 1, 1, 1]} : vector<3x3x4x128xbf16> to vector<1x1x4x128xbf16>
    %72 = vector.shape_cast %71 : vector<1x1x4x128xbf16> to vector<4x128xbf16>
    %cst_17 = arith.constant dense<0.000000e+00> : vector<64x128xf32>
    %73 = tpu.matmul %70, %72, %cst_17 {dimension_numbers = #tpu.dot_dimension_numbers<[1], [0], [0], [1], [0, 0, 1, 1], [], []>} : vector<64x4xbf16>, vector<4x128xbf16>, vector<64x128xf32> -> vector<64x128xf32>
    %74 = arith.addf %66, %73 : vector<64x128xf32>
    %c0_18 = arith.constant 0 : index
    %c0_19 = arith.constant 0 : index
    %75 = vector.load %arg3[%c0_18, %c0_19] : memref<1x128xf32, #tpu.memory_space<vmem>>, vector<1x128xf32>
    %76 = vector.broadcast %75 : vector<1x128xf32> to vector<64x128xf32>
    %77 = arith.addf %74, %76 : vector<64x128xf32>
    %c0_20 = arith.constant 0 : index
    %c0_21 = arith.constant 0 : index
    %78 = vector.load %arg4[%c0_20, %c0_21] : memref<64x128xf32, #tpu.memory_space<vmem>>, vector<64x128xf32>
    tpu.vector_store %arg4[%c0_20, %c0_21], %77 {strides = array<i32>} : memref<64x128xf32, #tpu.memory_space<vmem>>, vector<64x128xf32>,
    return
  }
  func.func @transform_0(%arg0: i32) -> (i32, i32, i32, i32, i32, i32) {
    %c0_i32 = arith.constant 0 : i32
    %c0_i32_0 = arith.constant 0 : i32
    %c0_i32_1 = arith.constant 0 : i32
    %c0_i32_2 = arith.constant 0 : i32
    %c0_i32_3 = arith.constant 0 : i32
    %c0_i32_4 = arith.constant 0 : i32
    return %arg0, %c0_i32, %c0_i32_0, %c0_i32_1, %c0_i32_2, %c0_i32_3 : i32, i32, i32, i32, i32, i32
  }
  func.func @transform_1(%arg0: i32) -> (i32, i32, i32, i32) {
    %c0_i32 = arith.constant 0 : i32
    %c0_i32_0 = arith.constant 0 : i32
    %c0_i32_1 = arith.constant 0 : i32
    %c0_i32_2 = arith.constant 0 : i32
    %c0_i32_3 = arith.constant 0 : i32
    return %c0_i32, %c0_i32_0, %c0_i32_1, %c0_i32_2 : i32, i32, i32, i32
  }
  func.func @transform_2(%arg0: i32) -> (i32, i32) {
    %c0_i32 = arith.constant 0 : i32
    %c0_i32_0 = arith.constant 0 : i32
    %c0_i32_1 = arith.constant 0 : i32
    return %c0_i32, %c0_i32_0 : i32, i32
  }
  func.func @transform_3(%arg0: i32) -> (i32, i32) {
    %c0_i32 = arith.constant 0 : i32
    %c0_i32_0 = arith.constant 0 : i32
    return %arg0, %c0_i32 : i32, i32
  }
}

</mosaic_0001>

<llo_original>
// kernel: _lambda_.2
$region0: #{_lambda_.2}
  #allocation0 [shape = 'u32[]', space=smem, size = 0x4, offset = 0x4, fixed_abs, tag = 'smem constant byte address 0x4 - core index']
  #allocation1 [shape = 'u32[72,128]{1,0:T(1,128)}', space=vmem, size = 0x9000, scoped, tag = 'internal scratch']
  %s0 = inlined_call_operand.vmem [shape: f32[2,18,18,4], index: 0, kind: input, shape index: {}]
  %s1 = inlined_call_operand.vmem [shape: f32[2,16,16,4], index: 1, kind: output, shape index: {}]
  %s2 = sld [smem:[#allocation0]]
  $region37: #{_lambda_.2} parent=0
    _
  %s4 = ssub.s32 1, %s2
  %s5 = scalar_select 0, %s4, %s2
  loop: start=0, step=1, limit=4
  $region2: #{_lambda_.2} parent=0 // loop_pre_header
    _
  $region3: #{_lambda_.2} parent=0 // loop_header
    %s7 = sphi 0, %s11
    %p8 = scmp.ge.s32.totalorder %s7, 4
    %s17 = sphi 0, %s19
    %s20 = sphi 0, %s17
    %s21 = sphi 0, %s20
    %s37 = sphi 0, %s21
    %s43 = sphi 0, %s45
    %s46 = sphi 0, %s43
    %s47 = sphi 0, %s46
    %s63 = sphi 0, %s47
  $region4: #{_lambda_.2} parent=0 // loop_header_branch
    %10 = sbr.rel (%p8) target = $region8
  $region5: #{_lambda_.2} parent=0 // loop_body
    %s12 = ssub.s32 %s7, 1
    %s13 = ssub.s32 %s7, 2
    %s14 = sadd.s32 %s7, 1
    %s15 = ssub.s32 %s7, %s14
    %p16 = scmp.eq.s32.totalorder %s15, 0
    %s18 = sadd.s32 %s17, 1
    %s19 = scalar_select %p16, %s17, %s18
    %p22 = pneg %p16
    %p23 = scmp.eq.s32.totalorder %s7, 1
    %p24 = por %p22, %p23
    %p25 = scmp.ne.s32.totalorder %s17, %s20
    %p26 = scmp.eq.s32.totalorder %s7, 0
    %p27 = por %p25, %p26
    %p28 = scmp.ne.s32.totalorder %s17, %s20
    %p29 = scmp.eq.s32.totalorder %s12, 1
    %p30 = por %p28, %p29
    %p31 = scmp.ne.s32.totalorder %s20, %s21
    %p32 = scmp.eq.s32.totalorder %s12, 0
    %p33 = por %p31, %p32
    %p34 = scmp.ne.s32.totalorder %s20, %s21
    %p35 = scmp.eq.s32.totalorder %s13, 1
    %p36 = por %p34, %p35
    %p38 = scmp.ne.s32.totalorder %s21, %s37
    %p39 = scmp.eq.s32.totalorder %s13, 0
    %p40 = por %p38, %p39
    %s41 = ssub.s32 %s7, %s14
    %p42 = scmp.eq.s32.totalorder %s41, 0
    %s44 = sadd.s32 %s43, 1
    %s45 = scalar_select %p42, %s43, %s44
    %p48 = pneg %p42
    %p49 = scmp.eq.s32.totalorder %s7, 1
    %p50 = por %p48, %p49
    %p51 = scmp.ne.s32.totalorder %s43, %s46
    %p52 = scmp.eq.s32.totalorder %s7, 0
    %p53 = por %p51, %p52
    %p54 = scmp.ne.s32.totalorder %s43, %s46
    %p55 = scmp.eq.s32.totalorder %s12, 1
    %p56 = por %p54, %p55
    %p57 = scmp.ne.s32.totalorder %s46, %s47
    %p58 = scmp.eq.s32.totalorder %s12, 0
    %p59 = por %p57, %p58
    %p60 = scmp.ne.s32.totalorder %s46, %s47
    %p61 = scmp.eq.s32.totalorder %s13, 1
    %p62 = por %p60, %p61
    %p64 = scmp.ne.s32.totalorder %s47, %s63
    %p65 = scmp.eq.s32.totalorder %s13, 0
    %p66 = por %p64, %p65
    %p67 = scmp.le.s32.totalorder 1, %s7
    %p68 = scmp.lt.s32.totalorder %s7, 3
    %p69 = pnand %p67, %p68
    %p70 = pneg %p69
    // Predicated region
    $region9: #{_lambda_.2} parent=5 // pred_check
      _
    $region10: #{_lambda_.2} parent=5 // pred_check_branch
      %72 = sbr.rel (%p69) target = $region12
    $region11: #{_lambda_.2} parent=5 // pred_region
      %s73 = ssub.s32 %s7, 1
    $region12: #{_lambda_.2} parent=5 // pred_fallthru
      _
    %p74 = scmp.lt.s32.totalorder %s7, 2
    // Predicated region
    $region13: #{_lambda_.2} parent=5 // pred_check
      %p75 = pneg %p74
    $region14: #{_lambda_.2} parent=5 // pred_check_branch
      %77 = sbr.rel (%p75) target = $region16
    $region15: #{_lambda_.2} parent=5 // pred_region
      // Predicated region
      $region17: #{_lambda_.2} parent=15 // pred_check
        %p78 = pneg %p27
      $region18: #{_lambda_.2} parent=15 // pred_check_branch
        %80 = sbr.rel (%p78) target = $region20
      $region19: #{_lambda_.2} parent=15 // pred_region
        %p81 = scmp.lt.s32.totalorder %s7, 1
        %s82 = scalar_select %p81, %s7, 1
        %s83 = smul.addr %s82, 54
        %s84 = smul.addr %s83, 8
        %s85 = scalar_lea.vmem %s0, %s84
      $region20: #{_lambda_.2} parent=15 // pred_fallthru
        _
    $region16: #{_lambda_.2} parent=5 // pred_fallthru
      _
    %p86 = scmp.le.s32.totalorder 1, %s7
    %p87 = scmp.lt.s32.totalorder %s7, 3
    %p88 = pnand %p86, %p87
    %p89 = pneg %p88
    // Predicated region
    $region21: #{_lambda_.2} parent=5 // pred_check
      _
    $region22: #{_lambda_.2} parent=5 // pred_check_branch
      %91 = sbr.rel (%p88) target = $region24
    $region23: #{_lambda_.2} parent=5 // pred_region
      %s92 = ssub.s32 %s7, 1
      %p93 = scmp.lt.s32.totalorder %s12, 1
      %s94 = scalar_select %p93, %s12, 1
      %s95 = smul.addr %s94, 54
      %s96 = smul.addr %s95, 8
      %s97 = scalar_lea.vmem %s0, %s96
      %p98 = pneg %p33
      %p99 = pneg %p30
      %p100 = pneg %p59
      %p101 = pneg %p56
      %p102 = scmp.lt.s32.totalorder %s12, 1
      %s103 = scalar_select %p102, %s12, 1
      %s104 = smul.addr %s103, 32
      %s105 = smul.addr %s104, 8
      %s106 = scalar_lea.vmem %s1, %s105
      %p107 = scmp.lt.s32.totalorder %s12, 1
      %s108 = scalar_select %p107, %s12, 1
      %s109 = smul.addr %s108, 54
      %s110 = smul.addr %s109, 8
      %s111 = scalar_lea.vmem %s0, %s110
      %p112 = scmp.lt.s32.totalorder %s12, 1
      %s113 = scalar_select %p112, %s12, 1
      %s114 = smul.addr %s113, 32
      %s115 = smul.addr %s114, 8
      %s116 = scalar_lea.vmem %s1, %s115
      %v117 = vld [vmem:[%s111] sm:$0xff]
      %v118 = vld [vmem:[%s111 + $0x8] sm:$0xff]
      %v119 = vld [vmem:[%s111 + $0x10] sm:$0x3]
      %v120 = vld [vmem:[%s111 + $0x18] sm:$0xff]
      %v121 = vld [vmem:[%s111 + $0x20] sm:$0xff]
      %v122 = vld [vmem:[%s111 + $0x28] sm:$0x3]
      %v123 = vld [vmem:[%s111 + $0x30] sm:$0xff]
      %v124 = vld [vmem:[%s111 + $0x38] sm:$0xff]
      %v125 = vld [vmem:[%s111 + $0x40] sm:$0x3]
      %v126 = vld [vmem:[%s111 + $0x48] sm:$0xff]
      %v127 = vld [vmem:[%s111 + $0x50] sm:$0xff]
      %v128 = vld [vmem:[%s111 + $0x58] sm:$0x3]
      %v129 = vld [vmem:[%s111 + $0x60] sm:$0xff]
      %v130 = vld [vmem:[%s111 + $0x68] sm:$0xff]
      %v131 = vld [vmem:[%s111 + $0x70] sm:$0x3]
      %v132 = vld [vmem:[%s111 + $0x78] sm:$0xff]
      %v133 = vld [vmem:[%s111 + $0x80] sm:$0xff]
      %v134 = vld [vmem:[%s111 + $0x88] sm:$0x3]
      %v135 = vld [vmem:[%s111 + $0x90] sm:$0xff]
      %v136 = vld [vmem:[%s111 + $0x98] sm:$0xff]
      %v137 = vld [vmem:[%s111 + $0xa0] sm:$0x3]
      %v138 = vld [vmem:[%s111 + $0xa8] sm:$0xff]
      %v139 = vld [vmem:[%s111 + $0xb0] sm:$0xff]
      %v140 = vld [vmem:[%s111 + $0xb8] sm:$0x3]
      %v141 = vld [vmem:[%s111 + $0xc0] sm:$0xff]
      %v142 = vld [vmem:[%s111 + $0xc8] sm:$0xff]
      %v143 = vld [vmem:[%s111 + $0xd0] sm:$0x3]
      %v144 = vld [vmem:[%s111 + $0xd8] sm:$0xff]
      %v145 = vld [vmem:[%s111 + $0xe0] sm:$0xff]
      %v146 = vld [vmem:[%s111 + $0xe8] sm:$0x3]
      %v147 = vld [vmem:[%s111 + $0xf0] sm:$0xff]
      %v148 = vld [vmem:[%s111 + $0xf8] sm:$0xff]
      %v149 = vld [vmem:[%s111 + $0x100] sm:$0x3]
      %v150 = vld [vmem:[%s111 + $0x108] sm:$0xff]
      %v151 = vld [vmem:[%s111 + $0x110] sm:$0xff]
      %v152 = vld [vmem:[%s111 + $0x118] sm:$0x3]
      %v153 = vld [vmem:[%s111 + $0x120] sm:$0xff]
      %v154 = vld [vmem:[%s111 + $0x128] sm:$0xff]
      %v155 = vld [vmem:[%s111 + $0x130] sm:$0x3]
      %v156 = vld [vmem:[%s111 + $0x138] sm:$0xff]
      %v157 = vld [vmem:[%s111 + $0x140] sm:$0xff]
      %v158 = vld [vmem:[%s111 + $0x148] sm:$0x3]
      %v159 = vld [vmem:[%s111 + $0x150] sm:$0xff]
      %v160 = vld [vmem:[%s111 + $0x158] sm:$0xff]
      %v161 = vld [vmem:[%s111 + $0x160] sm:$0x3]
      %v162 = vld [vmem:[%s111 + $0x168] sm:$0xff]
      %v163 = vld [vmem:[%s111 + $0x170] sm:$0xff]
      %v164 = vld [vmem:[%s111 + $0x178] sm:$0x3]
      %v165 = vld [vmem:[%s111 + $0x180] sm:$0xff]
      %v166 = vld [vmem:[%s111 + $0x188] sm:$0xff]
      %v167 = vld [vmem:[%s111 + $0x190] sm:$0x3]
      %v168 = vld [vmem:[%s111 + $0x198] sm:$0xff]
      %v169 = vld [vmem:[%s111 + $0x1a0] sm:$0xff]
      %v170 = vld [vmem:[%s111 + $0x1a8] sm:$0x3]
      %v171 = vmul.f32 %v117, 0.25
      %v172 = vmul.f32 %v118, 0.25
      %v173 = vmul.f32 %v120, 0.25
      %v174 = vmul.f32 %v121, 0.25
      %v175 = vmul.f32 %v123, 0.25
      %v176 = vmul.f32 %v124, 0.25
      %v177 = vmul.f32 %v126, 0.25
      %v178 = vmul.f32 %v127, 0.25
      %v179 = vmul.f32 %v129, 0.25
      %v180 = vmul.f32 %v130, 0.25
      %v181 = vmul.f32 %v132, 0.25
      %v182 = vmul.f32 %v133, 0.25
      %v183 = vmul.f32 %v135, 0.25
      %v184 = vmul.f32 %v136, 0.25
      %v185 = vmul.f32 %v138, 0.25
      %v186 = vmul.f32 %v139, 0.25
      %v187 = vmul.f32 %v141, 0.25
      %v188 = vmul.f32 %v142, 0.25
      %v189 = vmul.f32 %v144, 0.25
      %v190 = vmul.f32 %v145, 0.25
      %v191 = vmul.f32 %v147, 0.25
      %v192 = vmul.f32 %v148, 0.25
      %v193 = vmul.f32 %v150, 0.25
      %v194 = vmul.f32 %v151, 0.25
      %v195 = vmul.f32 %v153, 0.25
      %v196 = vmul.f32 %v154, 0.25
      %v197 = vmul.f32 %v156, 0.25
      %v198 = vmul.f32 %v157, 0.25
      %v199 = vmul.f32 %v159, 0.25
      %v200 = vmul.f32 %v160, 0.25
      %v201 = vmul.f32 %v162, 0.25
      %v202 = vmul.f32 %v163, 0.25
      %v203 = vmul.f32 %v165, 0.25
      %v204 = vmul.f32 %v166, 0.25
      %v205 = vmul.f32 %v168, 0.25
      %v206 = vmul.f32 %v169, 0.25
      %v207 = vmul.f32 %v117, 0.5
      %v208 = vmul.f32 %v118, 0.5
      %v209 = vmul.f32 %v119, 0.5
      %v210 = vmul.f32 %v120, 0.5
      %v211 = vmul.f32 %v121, 0.5
      %v212 = vmul.f32 %v122, 0.5
      %v213 = vmul.f32 %v123, 0.5
      %v214 = vmul.f32 %v124, 0.5
      %v215 = vmul.f32 %v125, 0.5
      %v216 = vmul.f32 %v126, 0.5
      %v217 = vmul.f32 %v127, 0.5
      %v218 = vmul.f32 %v128, 0.5
      %v219 = vmul.f32 %v129, 0.5
      %v220 = vmul.f32 %v130, 0.5
      %v221 = vmul.f32 %v131, 0.5
      %v222 = vmul.f32 %v132, 0.5
      %v223 = vmul.f32 %v133, 0.5
      %v224 = vmul.f32 %v134, 0.5
      %v225 = vmul.f32 %v135, 0.5
      %v226 = vmul.f32 %v136, 0.5
      %v227 = vmul.f32 %v137, 0.5
      %v228 = vmul.f32 %v138, 0.5
      %v229 = vmul.f32 %v139, 0.5
      %v230 = vmul.f32 %v140, 0.5
      %v231 = vmul.f32 %v141, 0.5
      %v232 = vmul.f32 %v142, 0.5
      %v233 = vmul.f32 %v143, 0.5
      %v234 = vmul.f32 %v144, 0.5
      %v235 = vmul.f32 %v145, 0.5
      %v236 = vmul.f32 %v146, 0.5
      %v237 = vmul.f32 %v147, 0.5
      %v238 = vmul.f32 %v148, 0.5
      %v239 = vmul.f32 %v149, 0.5
      %v240 = vmul.f32 %v150, 0.5
      %v241 = vmul.f32 %v151, 0.5
      %v242 = vmul.f32 %v152, 0.5
      %v243 = vmul.f32 %v153, 0.5
      %v244 = vmul.f32 %v154, 0.5
      %v245 = vmul.f32 %v155, 0.5
      %v246 = vmul.f32 %v156, 0.5
      %v247 = vmul.f32 %v157, 0.5
      %v248 = vmul.f32 %v158, 0.5
      %v249 = vmul.f32 %v159, 0.5
      %v250 = vmul.f32 %v160, 0.5
      %v251 = vmul.f32 %v161, 0.5
      %v252 = vmul.f32 %v162, 0.5
      %v253 = vmul.f32 %v163, 0.5
      %v254 = vmul.f32 %v164, 0.5
      %v255 = vmul.f32 %v165, 0.5
      %v256 = vmul.f32 %v166, 0.5
      %v257 = vmul.f32 %v167, 0.5
      %v258 = vmul.f32 %v168, 0.5
      %v259 = vmul.f32 %v169, 0.5
      %v260 = vmul.f32 %v170, 0.5
      %vm315 = vcmask 1046528
      %v316 = vrot.slane %v207, 1
      %v317 = vrot.slane %v208, 1
      %v318 = vsel %vm315, %v316, %v317
      %v319 = vrot.slane %v209, 1
      %v320 = vsel %vm315, %v317, %v319
      %v321 = vrot.slane %v210, 1
      %v322 = vrot.slane %v211, 1
      %v323 = vsel %vm315, %v321, %v322
      %v324 = vrot.slane %v212, 1
      %v325 = vsel %vm315, %v322, %v324
      %v326 = vrot.slane %v213, 1
      %v327 = vrot.slane %v214, 1
      %v328 = vsel %vm315, %v326, %v327
      %v329 = vrot.slane %v215, 1
      %v330 = vsel %vm315, %v327, %v329
      %v331 = vrot.slane %v216, 1
      %v332 = vrot.slane %v217, 1
      %v333 = vsel %vm315, %v331, %v332
      %v334 = vrot.slane %v218, 1
      %v335 = vsel %vm315, %v332, %v334
      %v336 = vrot.slane %v219, 1
      %v337 = vrot.slane %v220, 1
      %v338 = vsel %vm315, %v336, %v337
      %v339 = vrot.slane %v221, 1
      %v340 = vsel %vm315, %v337, %v339
      %v341 = vrot.slane %v222, 1
      %v342 = vrot.slane %v223, 1
      %v343 = vsel %vm315, %v341, %v342
      %v344 = vrot.slane %v224, 1
      %v345 = vsel %vm315, %v342, %v344
      %v346 = vrot.slane %v225, 1
      %v347 = vrot.slane %v226, 1
      %v348 = vsel %vm315, %v346, %v347
      %v349 = vrot.slane %v227, 1
      %v350 = vsel %vm315, %v347, %v349
      %v351 = vrot.slane %v228, 1
      %v352 = vrot.slane %v229, 1
      %v353 = vsel %vm315, %v351, %v352
      %v354 = vrot.slane %v230, 1
      %v355 = vsel %vm315, %v352, %v354
      %v356 = vrot.slane %v231, 1
      %v357 = vrot.slane %v232, 1
      %v358 = vsel %vm315, %v356, %v357
      %v359 = vrot.slane %v233, 1
      %v360 = vsel %vm315, %v357, %v359
      %v361 = vrot.slane %v234, 1
      %v362 = vrot.slane %v235, 1
      %v363 = vsel %vm315, %v361, %v362
      %v364 = vrot.slane %v236, 1
      %v365 = vsel %vm315, %v362, %v364
      %v366 = vrot.slane %v237, 1
      %v367 = vrot.slane %v238, 1
      %v368 = vsel %vm315, %v366, %v367
      %v369 = vrot.slane %v239, 1
      %v370 = vsel %vm315, %v367, %v369
      %v371 = vrot.slane %v240, 1
      %v372 = vrot.slane %v241, 1
      %v373 = vsel %vm315, %v371, %v372
      %v374 = vrot.slane %v242, 1
      %v375 = vsel %vm315, %v372, %v374
      %v376 = vrot.slane %v243, 1
      %v377 = vrot.slane %v244, 1
      %v378 = vsel %vm315, %v376, %v377
      %v379 = vrot.slane %v245, 1
      %v380 = vsel %vm315, %v377, %v379
      %v381 = vrot.slane %v246, 1
      %v382 = vrot.slane %v247, 1
      %v383 = vsel %vm315, %v381, %v382
      %v384 = vrot.slane %v248, 1
      %v385 = vsel %vm315, %v382, %v384
      %v386 = vrot.slane %v249, 1
      %v387 = vrot.slane %v250, 1
      %v388 = vsel %vm315, %v386, %v387
      %v389 = vrot.slane %v251, 1
      %v390 = vsel %vm315, %v387, %v389
      %v391 = vrot.slane %v252, 1
      %v392 = vrot.slane %v253, 1
      %v393 = vsel %vm315, %v391, %v392
      %v394 = vrot.slane %v254, 1
      %v395 = vsel %vm315, %v392, %v394
      %v396 = vrot.slane %v255, 1
      %v397 = vrot.slane %v256, 1
      %v398 = vsel %vm315, %v396, %v397
      %v399 = vrot.slane %v257, 1
      %v400 = vsel %vm315, %v397, %v399
      %v401 = vrot.slane %v258, 1
      %v402 = vrot.slane %v259, 1
      %v403 = vsel %vm315, %v401, %v402
      %v404 = vrot.slane %v260, 1
      %v405 = vsel %vm315, %v402, %v404
      %v442 = vadd.f32 %v171, %v318
      %v443 = vadd.f32 %v172, %v320
      %v444 = vadd.f32 %v173, %v323
      %v445 = vadd.f32 %v174, %v325
      %v446 = vadd.f32 %v175, %v328
      %v447 = vadd.f32 %v176, %v330
      %v448 = vadd.f32 %v177, %v333
      %v449 = vadd.f32 %v178, %v335
      %v450 = vadd.f32 %v179, %v338
      %v451 = vadd.f32 %v180, %v340
      %v452 = vadd.f32 %v181, %v343
      %v453 = vadd.f32 %v182, %v345
      %v454 = vadd.f32 %v183, %v348
      %v455 = vadd.f32 %v184, %v350
      %v456 = vadd.f32 %v185, %v353
      %v457 = vadd.f32 %v186, %v355
      %v458 = vadd.f32 %v187, %v358
      %v459 = vadd.f32 %v188, %v360
      %v460 = vadd.f32 %v189, %v363
      %v461 = vadd.f32 %v190, %v365
      %v462 = vadd.f32 %v191, %v368
      %v463 = vadd.f32 %v192, %v370
      %v464 = vadd.f32 %v193, %v373
      %v465 = vadd.f32 %v194, %v375
      %v466 = vadd.f32 %v195, %v378
      %v467 = vadd.f32 %v196, %v380
      %v468 = vadd.f32 %v197, %v383
      %v469 = vadd.f32 %v198, %v385
      %v470 = vadd.f32 %v199, %v388
      %v471 = vadd.f32 %v200, %v390
      %v472 = vadd.f32 %v201, %v393
      %v473 = vadd.f32 %v202, %v395
      %v474 = vadd.f32 %v203, %v398
      %v475 = vadd.f32 %v204, %v400
      %v476 = vadd.f32 %v205, %v403
      %v477 = vadd.f32 %v206, %v405
      %v478 = vmul.f32 %v119, 0.25
      %v479 = vmul.f32 %v122, 0.25
      %v480 = vmul.f32 %v125, 0.25
      %v481 = vmul.f32 %v128, 0.25
      %v482 = vmul.f32 %v131, 0.25
      %v483 = vmul.f32 %v134, 0.25
      %v484 = vmul.f32 %v137, 0.25
      %v485 = vmul.f32 %v140, 0.25
      %v486 = vmul.f32 %v143, 0.25
      %v487 = vmul.f32 %v146, 0.25
      %v488 = vmul.f32 %v149, 0.25
      %v489 = vmul.f32 %v152, 0.25
      %v490 = vmul.f32 %v155, 0.25
      %v491 = vmul.f32 %v158, 0.25
      %v492 = vmul.f32 %v161, 0.25
      %v493 = vmul.f32 %v164, 0.25
      %v494 = vmul.f32 %v167, 0.25
      %v495 = vmul.f32 %v170, 0.25
      %vm550 = vcmask 1045504
      %v551 = vrot.slane %v171, 2
      %v552 = vrot.slane %v172, 2
      %v553 = vsel %vm550, %v551, %v552
      %v554 = vrot.slane %v478, 2
      %v555 = vsel %vm550, %v552, %v554
      %v556 = vrot.slane %v173, 2
      %v557 = vrot.slane %v174, 2
      %v558 = vsel %vm550, %v556, %v557
      %v559 = vrot.slane %v479, 2
      %v560 = vsel %vm550, %v557, %v559
      %v561 = vrot.slane %v175, 2
      %v562 = vrot.slane %v176, 2
      %v563 = vsel %vm550, %v561, %v562
      %v564 = vrot.slane %v480, 2
      %v565 = vsel %vm550, %v562, %v564
      %v566 = vrot.slane %v177, 2
      %v567 = vrot.slane %v178, 2
      %v568 = vsel %vm550, %v566, %v567
      %v569 = vrot.slane %v481, 2
      %v570 = vsel %vm550, %v567, %v569
      %v571 = vrot.slane %v179, 2
      %v572 = vrot.slane %v180, 2
      %v573 = vsel %vm550, %v571, %v572
      %v574 = vrot.slane %v482, 2
      %v575 = vsel %vm550, %v572, %v574
      %v576 = vrot.slane %v181, 2
      %v577 = vrot.slane %v182, 2
      %v578 = vsel %vm550, %v576, %v577
      %v579 = vrot.slane %v483, 2
      %v580 = vsel %vm550, %v577, %v579
      %v581 = vrot.slane %v183, 2
      %v582 = vrot.slane %v184, 2
      %v583 = vsel %vm550, %v581, %v582
      %v584 = vrot.slane %v484, 2
      %v585 = vsel %vm550, %v582, %v584
      %v586 = vrot.slane %v185, 2
      %v587 = vrot.slane %v186, 2
      %v588 = vsel %vm550, %v586, %v587
      %v589 = vrot.slane %v485, 2
      %v590 = vsel %vm550, %v587, %v589
      %v591 = vrot.slane %v187, 2
      %v592 = vrot.slane %v188, 2
      %v593 = vsel %vm550, %v591, %v592
      %v594 = vrot.slane %v486, 2
      %v595 = vsel %vm550, %v592, %v594
      %v596 = vrot.slane %v189, 2
      %v597 = vrot.slane %v190, 2
      %v598 = vsel %vm550, %v596, %v597
      %v599 = vrot.slane %v487, 2
      %v600 = vsel %vm550, %v597, %v599
      %v601 = vrot.slane %v191, 2
      %v602 = vrot.slane %v192, 2
      %v603 = vsel %vm550, %v601, %v602
      %v604 = vrot.slane %v488, 2
      %v605 = vsel %vm550, %v602, %v604
      %v606 = vrot.slane %v193, 2
      %v607 = vrot.slane %v194, 2
      %v608 = vsel %vm550, %v606, %v607
      %v609 = vrot.slane %v489, 2
      %v610 = vsel %vm550, %v607, %v609
      %v611 = vrot.slane %v195, 2
      %v612 = vrot.slane %v196, 2
      %v613 = vsel %vm550, %v611, %v612
      %v614 = vrot.slane %v490, 2
      %v615 = vsel %vm550, %v612, %v614
      %v616 = vrot.slane %v197, 2
      %v617 = vrot.slane %v198, 2
      %v618 = vsel %vm550, %v616, %v617
      %v619 = vrot.slane %v491, 2
      %v620 = vsel %vm550, %v617, %v619
      %v621 = vrot.slane %v199, 2
      %v622 = vrot.slane %v200, 2
      %v623 = vsel %vm550, %v621, %v622
      %v624 = vrot.slane %v492, 2
      %v625 = vsel %vm550, %v622, %v624
      %v626 = vrot.slane %v201, 2
      %v627 = vrot.slane %v202, 2
      %v628 = vsel %vm550, %v626, %v627
      %v629 = vrot.slane %v493, 2
      %v630 = vsel %vm550, %v627, %v629
      %v631 = vrot.slane %v203, 2
      %v632 = vrot.slane %v204, 2
      %v633 = vsel %vm550, %v631, %v632
      %v634 = vrot.slane %v494, 2
      %v635 = vsel %vm550, %v632, %v634
      %v636 = vrot.slane %v205, 2
      %v637 = vrot.slane %v206, 2
      %v638 = vsel %vm550, %v636, %v637
      %v639 = vrot.slane %v495, 2
      %v640 = vsel %vm550, %v637, %v639
      %v677 = vadd.f32 %v442, %v553
      %v678 = vadd.f32 %v443, %v555
      %v679 = vadd.f32 %v444, %v558
      %v680 = vadd.f32 %v445, %v560
      %v681 = vadd.f32 %v446, %v563
      %v682 = vadd.f32 %v447, %v565
      %v683 = vadd.f32 %v448, %v568
      %v684 = vadd.f32 %v449, %v570
      %v685 = vadd.f32 %v450, %v573
      %v686 = vadd.f32 %v451, %v575
      %v687 = vadd.f32 %v452, %v578
      %v688 = vadd.f32 %v453, %v580
      %v689 = vadd.f32 %v454, %v583
      %v690 = vadd.f32 %v455, %v585
      %v691 = vadd.f32 %v456, %v588
      %v692 = vadd.f32 %v457, %v590
      %v693 = vadd.f32 %v458, %v593
      %v694 = vadd.f32 %v459, %v595
      %v695 = vadd.f32 %v460, %v598
      %v696 = vadd.f32 %v461, %v600
      %v697 = vadd.f32 %v462, %v603
      %v698 = vadd.f32 %v463, %v605
      %v699 = vadd.f32 %v464, %v608
      %v700 = vadd.f32 %v465, %v610
      %v701 = vadd.f32 %v466, %v613
      %v702 = vadd.f32 %v467, %v615
      %v703 = vadd.f32 %v468, %v618
      %v704 = vadd.f32 %v469, %v620
      %v705 = vadd.f32 %v470, %v623
      %v706 = vadd.f32 %v471, %v625
      %v707 = vadd.f32 %v472, %v628
      %v708 = vadd.f32 %v473, %v630
      %v709 = vadd.f32 %v474, %v633
      %v710 = vadd.f32 %v475, %v635
      %v711 = vadd.f32 %v476, %v638
      %v712 = vadd.f32 %v477, %v640
      %v713 = vmul.f32 %v677, 0.25
      %v714 = vmul.f32 %v678, 0.25
      %v715 = vmul.f32 %v679, 0.25
      %v716 = vmul.f32 %v680, 0.25
      %v717 = vmul.f32 %v681, 0.25
      %v718 = vmul.f32 %v682, 0.25
      %v719 = vmul.f32 %v683, 0.25
      %v720 = vmul.f32 %v684, 0.25
      %v721 = vmul.f32 %v685, 0.25
      %v722 = vmul.f32 %v686, 0.25
      %v723 = vmul.f32 %v687, 0.25
      %v724 = vmul.f32 %v688, 0.25
      %v725 = vmul.f32 %v689, 0.25
      %v726 = vmul.f32 %v690, 0.25
      %v727 = vmul.f32 %v691, 0.25
      %v728 = vmul.f32 %v692, 0.25
      %v729 = vmul.f32 %v693, 0.25
      %v730 = vmul.f32 %v694, 0.25
      %v731 = vmul.f32 %v695, 0.25
      %v732 = vmul.f32 %v696, 0.25
      %v733 = vmul.f32 %v697, 0.25
      %v734 = vmul.f32 %v698, 0.25
      %v735 = vmul.f32 %v699, 0.25
      %v736 = vmul.f32 %v700, 0.25
      %v737 = vmul.f32 %v701, 0.25
      %v738 = vmul.f32 %v702, 0.25
      %v739 = vmul.f32 %v703, 0.25
      %v740 = vmul.f32 %v704, 0.25
      %v741 = vmul.f32 %v705, 0.25
      %v742 = vmul.f32 %v706, 0.25
      %v743 = vmul.f32 %v707, 0.25
      %v744 = vmul.f32 %v708, 0.25
      %v745 = vmul.f32 %v679, 0.5
      %v746 = vmul.f32 %v680, 0.5
      %v747 = vmul.f32 %v681, 0.5
      %v748 = vmul.f32 %v682, 0.5
      %v749 = vmul.f32 %v683, 0.5
      %v750 = vmul.f32 %v684, 0.5
      %v751 = vmul.f32 %v685, 0.5
      %v752 = vmul.f32 %v686, 0.5
      %v753 = vmul.f32 %v687, 0.5
      %v754 = vmul.f32 %v688, 0.5
      %v755 = vmul.f32 %v689, 0.5
      %v756 = vmul.f32 %v690, 0.5
      %v757 = vmul.f32 %v691, 0.5
      %v758 = vmul.f32 %v692, 0.5
      %v759 = vmul.f32 %v693, 0.5
      %v760 = vmul.f32 %v694, 0.5
      %v761 = vmul.f32 %v695, 0.5
      %v762 = vmul.f32 %v696, 0.5
      %v763 = vmul.f32 %v697, 0.5
      %v764 = vmul.f32 %v698, 0.5
      %v765 = vmul.f32 %v699, 0.5
      %v766 = vmul.f32 %v700, 0.5
      %v767 = vmul.f32 %v701, 0.5
      %v768 = vmul.f32 %v702, 0.5
      %v769 = vmul.f32 %v703, 0.5
      %v770 = vmul.f32 %v704, 0.5
      %v771 = vmul.f32 %v705, 0.5
      %v772 = vmul.f32 %v706, 0.5
      %v773 = vmul.f32 %v707, 0.5
      %v774 = vmul.f32 %v708, 0.5
      %v775 = vmul.f32 %v709, 0.5
      %v776 = vmul.f32 %v710, 0.5
      %v777 = vadd.f32 %v713, %v745
      %v778 = vadd.f32 %v714, %v746
      %v779 = vadd.f32 %v715, %v747
      %v780 = vadd.f32 %v716, %v748
      %v781 = vadd.f32 %v717, %v749
      %v782 = vadd.f32 %v718, %v750
      %v783 = vadd.f32 %v719, %v751
      %v784 = vadd.f32 %v720, %v752
      %v785 = vadd.f32 %v721, %v753
      %v786 = vadd.f32 %v722, %v754
      %v787 = vadd.f32 %v723, %v755
      %v788 = vadd.f32 %v724, %v756
      %v789 = vadd.f32 %v725, %v757
      %v790 = vadd.f32 %v726, %v758
      %v791 = vadd.f32 %v727, %v759
      %v792 = vadd.f32 %v728, %v760
      %v793 = vadd.f32 %v729, %v761
      %v794 = vadd.f32 %v730, %v762
      %v795 = vadd.f32 %v731, %v763
      %v796 = vadd.f32 %v732, %v764
      %v797 = vadd.f32 %v733, %v765
      %v798 = vadd.f32 %v734, %v766
      %v799 = vadd.f32 %v735, %v767
      %v800 = vadd.f32 %v736, %v768
      %v801 = vadd.f32 %v737, %v769
      %v802 = vadd.f32 %v738, %v770
      %v803 = vadd.f32 %v739, %v771
      %v804 = vadd.f32 %v740, %v772
      %v805 = vadd.f32 %v741, %v773
      %v806 = vadd.f32 %v742, %v774
      %v807 = vadd.f32 %v743, %v775
      %v808 = vadd.f32 %v744, %v776
      %v809 = vmul.f32 %v709, 0.25
      %v810 = vmul.f32 %v710, 0.25
      %v811 = vmul.f32 %v711, 0.25
      %v812 = vmul.f32 %v712, 0.25
      %v813 = vadd.f32 %v777, %v717
      %v814 = vadd.f32 %v778, %v718
      %v815 = vadd.f32 %v779, %v719
      %v816 = vadd.f32 %v780, %v720
      %v817 = vadd.f32 %v781, %v721
      %v818 = vadd.f32 %v782, %v722
      %v819 = vadd.f32 %v783, %v723
      %v820 = vadd.f32 %v784, %v724
      %v821 = vadd.f32 %v785, %v725
      %v822 = vadd.f32 %v786, %v726
      %v823 = vadd.f32 %v787, %v727
      %v824 = vadd.f32 %v788, %v728
      %v825 = vadd.f32 %v789, %v729
      %v826 = vadd.f32 %v790, %v730
      %v827 = vadd.f32 %v791, %v731
      %v828 = vadd.f32 %v792, %v732
      %v829 = vadd.f32 %v793, %v733
      %v830 = vadd.f32 %v794, %v734
      %v831 = vadd.f32 %v795, %v735
      %v832 = vadd.f32 %v796, %v736
      %v833 = vadd.f32 %v797, %v737
      %v834 = vadd.f32 %v798, %v738
      %v835 = vadd.f32 %v799, %v739
      %v836 = vadd.f32 %v800, %v740
      %v837 = vadd.f32 %v801, %v741
      %v838 = vadd.f32 %v802, %v742
      %v839 = vadd.f32 %v803, %v743
      %v840 = vadd.f32 %v804, %v744
      %v841 = vadd.f32 %v805, %v809
      %v842 = vadd.f32 %v806, %v810
      %v843 = vadd.f32 %v807, %v811
      %v844 = vadd.f32 %v808, %v812
      %vm845 = vcmask 31744
      %846 = vst.msk [vmem:[%s116] sm:$0xff] %vm845, %v813
      %847 = vst.msk [vmem:[%s116 + $0x8] sm:$0xff] %vm845, %v814
      %848 = vst.msk [vmem:[%s116 + $0x10] sm:$0xff] %vm845, %v815
      %849 = vst.msk [vmem:[%s116 + $0x18] sm:$0xff] %vm845, %v816
      %850 = vst.msk [vmem:[%s116 + $0x20] sm:$0xff] %vm845, %v817
      %851 = vst.msk [vmem:[%s116 + $0x28] sm:$0xff] %vm845, %v818
      %852 = vst.msk [vmem:[%s116 + $0x30] sm:$0xff] %vm845, %v819
      %853 = vst.msk [vmem:[%s116 + $0x38] sm:$0xff] %vm845, %v820
      %854 = vst.msk [vmem:[%s116 + $0x40] sm:$0xff] %vm845, %v821
      %855 = vst.msk [vmem:[%s116 + $0x48] sm:$0xff] %vm845, %v822
      %856 = vst.msk [vmem:[%s116 + $0x50] sm:$0xff] %vm845, %v823
      %857 = vst.msk [vmem:[%s116 + $0x58] sm:$0xff] %vm845, %v824
      %858 = vst.msk [vmem:[%s116 + $0x60] sm:$0xff] %vm845, %v825
      %859 = vst.msk [vmem:[%s116 + $0x68] sm:$0xff] %vm845, %v826
      %860 = vst.msk [vmem:[%s116 + $0x70] sm:$0xff] %vm845, %v827
      %861 = vst.msk [vmem:[%s116 + $0x78] sm:$0xff] %vm845, %v828
      %862 = vst.msk [vmem:[%s116 + $0x80] sm:$0xff] %vm845, %v829
      %863 = vst.msk [vmem:[%s116 + $0x88] sm:$0xff] %vm845, %v830
      %864 = vst.msk [vmem:[%s116 + $0x90] sm:$0xff] %vm845, %v831
      %865 = vst.msk [vmem:[%s116 + $0x98] sm:$0xff] %vm845, %v832
      %866 = vst.msk [vmem:[%s116 + $0xa0] sm:$0xff] %vm845, %v833
      %867 = vst.msk [vmem:[%s116 + $0xa8] sm:$0xff] %vm845, %v834
      %868 = vst.msk [vmem:[%s116 + $0xb0] sm:$0xff] %vm845, %v835
      %869 = vst.msk [vmem:[%s116 + $0xb8] sm:$0xff] %vm845, %v836
      %870 = vst.msk [vmem:[%s116 + $0xc0] sm:$0xff] %vm845, %v837
      %871 = vst.msk [vmem:[%s116 + $0xc8] sm:$0xff] %vm845, %v838
      %872 = vst.msk [vmem:[%s116 + $0xd0] sm:$0xff] %vm845, %v839
      %873 = vst.msk [vmem:[%s116 + $0xd8] sm:$0xff] %vm845, %v840
      %874 = vst.msk [vmem:[%s116 + $0xe0] sm:$0xff] %vm845, %v841
      %875 = vst.msk [vmem:[%s116 + $0xe8] sm:$0xff] %vm845, %v842
      %876 = vst.msk [vmem:[%s116 + $0xf0] sm:$0xff] %vm845, %v843
      %877 = vst.msk [vmem:[%s116 + $0xf8] sm:$0xff] %vm845, %v844
      %p878 = scmp.lt.s32.totalorder %s12, 1
      %s879 = scalar_select %p878, %s12, 1
      %s880 = smul.addr %s879, 32
      %s881 = smul.addr %s880, 8
      %s882 = scalar_lea.vmem %s1, %s881
      // Predicated region
      $region25: #{_lambda_.2} parent=23 // pred_check
        %p883 = pneg %p56
      $region26: #{_lambda_.2} parent=23 // pred_check_branch
        %885 = sbr.rel (%p883) target = $region28
      $region27: #{_lambda_.2} parent=23 // pred_region
        _
      $region28: #{_lambda_.2} parent=23 // pred_fallthru
        _
    $region24: #{_lambda_.2} parent=5 // pred_fallthru
      _
    %p886 = scmp.le.s32.totalorder 2, %s7
    // Predicated region
    $region29: #{_lambda_.2} parent=5 // pred_check
      %p887 = pneg %p886
    $region30: #{_lambda_.2} parent=5 // pred_check_branch
      %889 = sbr.rel (%p887) target = $region32
    $region31: #{_lambda_.2} parent=5 // pred_region
      %s890 = ssub.s32 %s7, 2
      // Predicated region
      $region33: #{_lambda_.2} parent=31 // pred_check
        %p891 = pneg %p62
      $region34: #{_lambda_.2} parent=31 // pred_check_branch
        %893 = sbr.rel (%p891) target = $region36
      $region35: #{_lambda_.2} parent=31 // pred_region
        %p894 = scmp.lt.s32.totalorder %s13, 1
        %s895 = scalar_select %p894, %s13, 1
        %s896 = smul.addr %s895, 32
        %s897 = smul.addr %s896, 8
        %s898 = scalar_lea.vmem %s1, %s897
      $region36: #{_lambda_.2} parent=31 // pred_fallthru
        _
    $region32: #{_lambda_.2} parent=5 // pred_fallthru
      _
  $region6: #{_lambda_.2} parent=0 // loop_footer
    %s11 = sadd.s32 1, %s7
  $region7: #{_lambda_.2} parent=0 // loop_footer_branch
    %6 = sbr.rel target = $region3
  $region8: #{_lambda_.2} parent=0 // loop_exit
    _

// kernel: _lambda_.3
$region0: #{_lambda_.3}
  #allocation0 [shape = 'u32[]', space=smem, size = 0x4, offset = 0x4, fixed_abs, tag = 'smem constant byte address 0x4 - core index']
  #allocation1 [shape = 'u32[72,128]{1,0:T(1,128)}', space=vmem, size = 0x9000, scoped, tag = 'internal scratch']
  %s0 = inlined_call_operand.vmem [shape: f32[2,2,2,9,9,4], index: 0, kind: input, shape index: {}]
  %s1 = inlined_call_operand.vmem [shape: bf16[3,3,4,128], index: 1, kind: input, shape index: {}]
  %s2 = inlined_call_operand.vmem [shape: f32[1,128], index: 2, kind: input, shape index: {}]
  %s3 = inlined_call_operand.vmem [shape: f32[128,128], index: 3, kind: output, shape index: {}]
  %s4 = sld [smem:[#allocation0]]
  $region45: #{_lambda_.3} parent=0
    _
  %s6 = ssub.s32 1, %s4
  %s7 = scalar_select 0, %s6, %s4
  loop: start=0, step=1, limit=4
  $region2: #{_lambda_.3} parent=0 // loop_pre_header
    _
  $region3: #{_lambda_.3} parent=0 // loop_header
    %s9 = sphi 0, %s13
    %p10 = scmp.ge.s32.totalorder %s9, 4
    %s19 = sphi 0, %s21
    %s22 = sphi 0, %s19
    %s23 = sphi 0, %s22
    %s39 = sphi 0, %s23
    %s43 = sphi 0, %s43
    %s45 = sphi 0, %s43
    %s46 = sphi 0, %s45
    %s60 = sphi 0, %s46
    %s64 = sphi 0, %s64
    %s66 = sphi 0, %s64
    %s67 = sphi 0, %s66
    %s81 = sphi 0, %s67
    %s87 = sphi 0, %s89
    %s90 = sphi 0, %s87
    %s91 = sphi 0, %s90
    %s107 = sphi 0, %s91
  $region4: #{_lambda_.3} parent=0 // loop_header_branch
    %12 = sbr.rel (%p10) target = $region8
  $region5: #{_lambda_.3} parent=0 // loop_body
    %s14 = ssub.s32 %s9, 1
    %s15 = ssub.s32 %s9, 2
    %s16 = sadd.s32 %s9, 1
    %s17 = ssub.s32 %s9, %s16
    %p18 = scmp.eq.s32.totalorder %s17, 0
    %s20 = sadd.s32 %s19, 1
    %s21 = scalar_select %p18, %s19, %s20
    %p24 = pneg %p18
    %p25 = scmp.eq.s32.totalorder %s9, 1
    %p26 = por %p24, %p25
    %p27 = scmp.ne.s32.totalorder %s19, %s22
    %p28 = scmp.eq.s32.totalorder %s9, 0
    %p29 = por %p27, %p28
    %p30 = scmp.ne.s32.totalorder %s19, %s22
    %p31 = scmp.eq.s32.totalorder %s14, 1
    %p32 = por %p30, %p31
    %p33 = scmp.ne.s32.totalorder %s22, %s23
    %p34 = scmp.eq.s32.totalorder %s14, 0
    %p35 = por %p33, %p34
    %p36 = scmp.ne.s32.totalorder %s22, %s23
    %p37 = scmp.eq.s32.totalorder %s15, 1
    %p38 = por %p36, %p37
    %p40 = scmp.ne.s32.totalorder %s23, %s39
    %p41 = scmp.eq.s32.totalorder %s15, 0
    %p42 = por %p40, %p41
    %s44 = sadd.s32 %s43, 1
    %p47 = scmp.eq.s32.totalorder %s9, 1
    %p48 = scmp.ne.s32.totalorder %s43, %s45
    %p49 = scmp.eq.s32.totalorder %s9, 0
    %p50 = por %p48, %p49
    %p51 = scmp.ne.s32.totalorder %s43, %s45
    %p52 = scmp.eq.s32.totalorder %s14, 1
    %p53 = por %p51, %p52
    %p54 = scmp.ne.s32.totalorder %s45, %s46
    %p55 = scmp.eq.s32.totalorder %s14, 0
    %p56 = por %p54, %p55
    %p57 = scmp.ne.s32.totalorder %s45, %s46
    %p58 = scmp.eq.s32.totalorder %s15, 1
    %p59 = por %p57, %p58
    %p61 = scmp.ne.s32.totalorder %s46, %s60
    %p62 = scmp.eq.s32.totalorder %s15, 0
    %p63 = por %p61, %p62
    %s65 = sadd.s32 %s64, 1
    %p68 = scmp.eq.s32.totalorder %s9, 1
    %p69 = scmp.ne.s32.totalorder %s64, %s66
    %p70 = scmp.eq.s32.totalorder %s9, 0
    %p71 = por %p69, %p70
    %p72 = scmp.ne.s32.totalorder %s64, %s66
    %p73 = scmp.eq.s32.totalorder %s14, 1
    %p74 = por %p72, %p73
    %p75 = scmp.ne.s32.totalorder %s66, %s67
    %p76 = scmp.eq.s32.totalorder %s14, 0
    %p77 = por %p75, %p76
    %p78 = scmp.ne.s32.totalorder %s66, %s67
    %p79 = scmp.eq.s32.totalorder %s15, 1
    %p80 = por %p78, %p79
    %p82 = scmp.ne.s32.totalorder %s67, %s81
    %p83 = scmp.eq.s32.totalorder %s15, 0
    %p84 = por %p82, %p83
    %s85 = ssub.s32 %s9, %s16
    %p86 = scmp.eq.s32.totalorder %s85, 0
    %s88 = sadd.s32 %s87, 1
    %s89 = scalar_select %p86, %s87, %s88
    %p92 = pneg %p86
    %p93 = scmp.eq.s32.totalorder %s9, 1
    %p94 = por %p92, %p93
    %p95 = scmp.ne.s32.totalorder %s87, %s90
    %p96 = scmp.eq.s32.totalorder %s9, 0
    %p97 = por %p95, %p96
    %p98 = scmp.ne.s32.totalorder %s87, %s90
    %p99 = scmp.eq.s32.totalorder %s14, 1
    %p100 = por %p98, %p99
    %p101 = scmp.ne.s32.totalorder %s90, %s91
    %p102 = scmp.eq.s32.totalorder %s14, 0
    %p103 = por %p101, %p102
    %p104 = scmp.ne.s32.totalorder %s90, %s91
    %p105 = scmp.eq.s32.totalorder %s15, 1
    %p106 = por %p104, %p105
    %p108 = scmp.ne.s32.totalorder %s91, %s107
    %p109 = scmp.eq.s32.totalorder %s15, 0
    %p110 = por %p108, %p109
    %p111 = scmp.le.s32.totalorder 1, %s9
    %p112 = scmp.lt.s32.totalorder %s9, 3
    %p113 = pnand %p111, %p112
    %p114 = pneg %p113
    // Predicated region
    $region9: #{_lambda_.3} parent=5 // pred_check
      _
    $region10: #{_lambda_.3} parent=5 // pred_check_branch
      %116 = sbr.rel (%p113) target = $region12
    $region11: #{_lambda_.3} parent=5 // pred_region
      %s117 = ssub.s32 %s9, 1
      // Predicated region
      $region13: #{_lambda_.3} parent=11 // pred_check
        %p118 = pneg %p56
      $region14: #{_lambda_.3} parent=11 // pred_check_branch
        %120 = sbr.rel (%p118) target = $region16
      $region15: #{_lambda_.3} parent=11 // pred_region
        _
      $region16: #{_lambda_.3} parent=11 // pred_fallthru
        _
      // Predicated region
      $region17: #{_lambda_.3} parent=11 // pred_check
        %p121 = pneg %p77
      $region18: #{_lambda_.3} parent=11 // pred_check_branch
        %123 = sbr.rel (%p121) target = $region20
      $region19: #{_lambda_.3} parent=11 // pred_region
        _
      $region20: #{_lambda_.3} parent=11 // pred_fallthru
        _
    $region12: #{_lambda_.3} parent=5 // pred_fallthru
      _
    %p124 = scmp.lt.s32.totalorder %s9, 2
    // Predicated region
    $region21: #{_lambda_.3} parent=5 // pred_check
      %p125 = pneg %p124
    $region22: #{_lambda_.3} parent=5 // pred_check_branch
      %127 = sbr.rel (%p125) target = $region24
    $region23: #{_lambda_.3} parent=5 // pred_region
      // Predicated region
      $region25: #{_lambda_.3} parent=23 // pred_check
        %p128 = pneg %p29
      $region26: #{_lambda_.3} parent=23 // pred_check_branch
        %130 = sbr.rel (%p128) target = $region28
      $region27: #{_lambda_.3} parent=23 // pred_region
        %p131 = scmp.lt.s32.totalorder %s9, 1
        %s132 = scalar_select %p131, %s9, 1
        %s133 = smul.addr %s132, 72
        %s134 = smul.addr %s133, 8
        %s135 = scalar_lea.vmem %s0, %s134
      $region28: #{_lambda_.3} parent=23 // pred_fallthru
        _
    $region24: #{_lambda_.3} parent=5 // pred_fallthru
      _
    %p136 = scmp.le.s32.totalorder 1, %s9
    %p137 = scmp.lt.s32.totalorder %s9, 3
    %p138 = pnand %p136, %p137
    %p139 = pneg %p138
    // Predicated region
    $region29: #{_lambda_.3} parent=5 // pred_check
      _
    $region30: #{_lambda_.3} parent=5 // pred_check_branch
      %141 = sbr.rel (%p138) target = $region32
    $region31: #{_lambda_.3} parent=5 // pred_region
      %s142 = ssub.s32 %s9, 1
      %p143 = scmp.lt.s32.totalorder %s14, 1
      %s144 = scalar_select %p143, %s14, 1
      %s145 = smul.addr %s144, 72
      %s146 = smul.addr %s145, 8
      %s147 = scalar_lea.vmem %s0, %s146
      %p148 = pneg %p35
      %p149 = pneg %p32
      %p150 = pneg %p56
      %p151 = pneg %p53
      %p152 = pneg %p77
      %p153 = pneg %p74
      %p154 = pneg %p103
      %p155 = pneg %p100
      %s156 = smul.u32 8, %s14
      %p157 = scmp.lt.s32.totalorder %s156, 15
      %s158 = scalar_select %p157, %s156, 15
      %s159 = smul.addr %s158, 8
      %s160 = scalar_lea.vmem %s3, %s159
      %p161 = scmp.lt.s32.totalorder %s14, 1
      %s162 = scalar_select %p161, %s14, 1
      %s163 = smul.addr %s162, 72
      %s164 = smul.addr %s163, 8
      %s165 = scalar_lea.vmem %s0, %s164
      %s166 = smul.u32 8, %s14
      %p167 = scmp.lt.s32.totalorder %s166, 15
      %s168 = scalar_select %p167, %s166, 15
      %s169 = smul.addr %s168, 8
      %s170 = scalar_lea.vmem %s3, %s169
      %s171 = smul.u32 8, %s14
      %v173 = vld [vmem:[%s165] sm:$0xff]
      %v174 = vld [vmem:[%s165 + $0x8] sm:$0x1]
      %v175 = vld [vmem:[%s165 + $0x10] sm:$0xff]
      %v176 = vld [vmem:[%s165 + $0x18] sm:$0x1]
      %v177 = vld [vmem:[%s165 + $0x20] sm:$0xff]
      %v178 = vld [vmem:[%s165 + $0x28] sm:$0x1]
      %v179 = vld [vmem:[%s165 + $0x30] sm:$0xff]
      %v180 = vld [vmem:[%s165 + $0x38] sm:$0x1]
      %v181 = vld [vmem:[%s165 + $0x40] sm:$0xff]
      %v182 = vld [vmem:[%s165 + $0x48] sm:$0x1]
      %v183 = vld [vmem:[%s165 + $0x50] sm:$0xff]
      %v184 = vld [vmem:[%s165 + $0x58] sm:$0x1]
      %v185 = vld [vmem:[%s165 + $0x60] sm:$0xff]
      %v186 = vld [vmem:[%s165 + $0x68] sm:$0x1]
      %v187 = vld [vmem:[%s165 + $0x70] sm:$0xff]
      %v188 = vld [vmem:[%s165 + $0x78] sm:$0x1]
      %v189 = vld [vmem:[%s165 + $0x80] sm:$0xff]
      %v190 = vld [vmem:[%s165 + $0x88] sm:$0x1]
      %v191 = vld [vmem:[%s165 + $0x90] sm:$0xff]
      %v192 = vld [vmem:[%s165 + $0xa0] sm:$0xff]
      %v193 = vld [vmem:[%s165 + $0xb0] sm:$0xff]
      %v194 = vld [vmem:[%s165 + $0xc0] sm:$0xff]
      %v195 = vld [vmem:[%s165 + $0xd0] sm:$0xff]
      %v196 = vld [vmem:[%s165 + $0xe0] sm:$0xff]
      %v197 = vld [vmem:[%s165 + $0xf0] sm:$0xff]
      %v198 = vld [vmem:[%s165 + $0x100] sm:$0xff]
      %v199 = vld [vmem:[%s165 + $0x110] sm:$0xff]
      %v200 = vld [vmem:[%s165 + $0x120] sm:$0xff]
      %v201 = vld [vmem:[%s165 + $0x128] sm:$0x1]
      %v202 = vld [vmem:[%s165 + $0x130] sm:$0xff]
      %v203 = vld [vmem:[%s165 + $0x138] sm:$0x1]
      %v204 = vld [vmem:[%s165 + $0x140] sm:$0xff]
      %v205 = vld [vmem:[%s165 + $0x148] sm:$0x1]
      %v206 = vld [vmem:[%s165 + $0x150] sm:$0xff]
      %v207 = vld [vmem:[%s165 + $0x158] sm:$0x1]
      %v208 = vld [vmem:[%s165 + $0x160] sm:$0xff]
      %v209 = vld [vmem:[%s165 + $0x168] sm:$0x1]
      %v210 = vld [vmem:[%s165 + $0x170] sm:$0xff]
      %v211 = vld [vmem:[%s165 + $0x178] sm:$0x1]
      %v212 = vld [vmem:[%s165 + $0x180] sm:$0xff]
      %v213 = vld [vmem:[%s165 + $0x188] sm:$0x1]
      %v214 = vld [vmem:[%s165 + $0x190] sm:$0xff]
      %v215 = vld [vmem:[%s165 + $0x198] sm:$0x1]
      %v216 = vld [vmem:[%s165 + $0x1b0] sm:$0xff]
      %v217 = vld [vmem:[%s165 + $0x1c0] sm:$0xff]
      %v218 = vld [vmem:[%s165 + $0x1d0] sm:$0xff]
      %v219 = vld [vmem:[%s165 + $0x1e0] sm:$0xff]
      %v220 = vld [vmem:[%s165 + $0x1f0] sm:$0xff]
      %v221 = vld [vmem:[%s165 + $0x200] sm:$0xff]
      %v222 = vld [vmem:[%s165 + $0x210] sm:$0xff]
      %v223 = vld [vmem:[%s165 + $0x220] sm:$0xff]
      %v224 = vld [vmem:[%s1] sm:$0x3]
      %v225 = vld [vmem:[%s1 + $0x2] sm:$0x3]
      %v226 = vld [vmem:[%s1 + $0x4] sm:$0x3]
      %v227 = vld [vmem:[%s1 + $0x6] sm:$0x3]
      %v228 = vld [vmem:[%s1 + $0x8] sm:$0x3]
      %v229 = vld [vmem:[%s1 + $0xa] sm:$0x3]
      %v230 = vld [vmem:[%s1 + $0xc] sm:$0x3]
      %v231 = vld [vmem:[%s1 + $0xe] sm:$0x3]
      %v232 = vld [vmem:[%s1 + $0x10] sm:$0x3]
      %v233 = vpack.c.bf16 %v175, %v173
      %v234 = vpack.c.bf16 %v179, %v177
      %v235 = vpack.c.bf16 %v183, %v181
      %v236 = vpack.c.bf16 %v187, %v185
      %v237 = vpack.c.bf16 %v192, %v191
      %v238 = vpack.c.bf16 %v194, %v193
      %v239 = vpack.c.bf16 %v196, %v195
      %v240 = vpack.c.bf16 %v198, %v197
      %vm241 = vcmask 31744
      %v243 = vsel %vm241, %v237, 0
      %v246 = vsel %vm241, %v238, 0
      %v249 = vsel %vm241, %v239, 0
      %v252 = vsel %vm241, %v240, 0
      %vm254 = vcmask 1041408
      %v256 = vsel %vm254, %v225, 0
      %258 = vmatpush.bf16.msra.mxu0 0
      %259 = vmatpush.bf16.msra.mxu0 0
      %260 = vmatpush.bf16.msra.mxu0 0
      %261 = vmatpush.bf16.msra.mxu0 0
      %262 = vmatpush.bf16.msra.mxu0 0
      %263 = vmatpush.bf16.msra.mxu0 0
      %264 = vmatpush.bf16.msra.mxu0 0
      %265 = vmatpush.bf16.msra.mxu0 %v256
      %266 = vmatmul.bf16.gmra.mxu0 %v243
      %v267 = vpop.f32.mrf.mxu0
      %v268 = vadd.f32 0.0, %v267
      %v269 = vpop.f32.mrf.mxu0
      %v270 = vadd.f32 0.0, %v269
      %271 = vmatmul.bf16.gmra.mxu0 %v246
      %v272 = vpop.f32.mrf.mxu0
      %v273 = vadd.f32 0.0, %v272
      %v274 = vpop.f32.mrf.mxu0
      %v275 = vadd.f32 0.0, %v274
      %276 = vmatmul.bf16.gmra.mxu0 %v249
      %v277 = vpop.f32.mrf.mxu0
      %v278 = vadd.f32 0.0, %v277
      %v279 = vpop.f32.mrf.mxu0
      %v280 = vadd.f32 0.0, %v279
      %281 = vmatmul.bf16.gmra.mxu0 %v252
      %v282 = vpop.f32.mrf.mxu0
      %v283 = vadd.f32 0.0, %v282
      %v284 = vpop.f32.mrf.mxu0
      %v285 = vadd.f32 0.0, %v284
      %286 = vdwg.mxu0
      %v288 = vsel %vm241, %v233, 0
      %v291 = vsel %vm241, %v234, 0
      %v294 = vsel %vm241, %v235, 0
      %v297 = vsel %vm241, %v236, 0
      %v300 = vsel %vm254, %v224, 0
      %302 = vmatpush.bf16.msra.mxu0 0
      %303 = vmatpush.bf16.msra.mxu0 0
      %304 = vmatpush.bf16.msra.mxu0 0
      %305 = vmatpush.bf16.msra.mxu0 0
      %306 = vmatpush.bf16.msra.mxu0 0
      %307 = vmatpush.bf16.msra.mxu0 0
      %308 = vmatpush.bf16.msra.mxu0 0
      %309 = vmatpush.bf16.msra.mxu0 %v300
      %310 = vmatmul.bf16.gmra.mxu0 %v288
      %v311 = vpop.f32.mrf.mxu0
      %v312 = vadd.f32 %v268, %v311
      %v313 = vpop.f32.mrf.mxu0
      %v314 = vadd.f32 %v270, %v313
      %315 = vmatmul.bf16.gmra.mxu0 %v291
      %v316 = vpop.f32.mrf.mxu0
      %v317 = vadd.f32 %v273, %v316
      %v318 = vpop.f32.mrf.mxu0
      %v319 = vadd.f32 %v275, %v318
      %320 = vmatmul.bf16.gmra.mxu0 %v294
      %v321 = vpop.f32.mrf.mxu0
      %v322 = vadd.f32 %v278, %v321
      %v323 = vpop.f32.mrf.mxu0
      %v324 = vadd.f32 %v280, %v323
      %325 = vmatmul.bf16.gmra.mxu0 %v297
      %v326 = vpop.f32.mrf.mxu0
      %v327 = vadd.f32 %v283, %v326
      %v328 = vpop.f32.mrf.mxu0
      %v329 = vadd.f32 %v285, %v328
      %330 = vdwg.mxu0
      %vm347 = vcmask 1046528
      %v348 = vrot.slane %v173, 1
      %v349 = vrot.slane %v174, 1
      %v350 = vsel %vm347, %v348, %v349
      %v351 = vrot.slane %v175, 1
      %v352 = vrot.slane %v176, 1
      %v353 = vsel %vm347, %v351, %v352
      %v354 = vrot.slane %v177, 1
      %v355 = vrot.slane %v178, 1
      %v356 = vsel %vm347, %v354, %v355
      %v357 = vrot.slane %v179, 1
      %v358 = vrot.slane %v180, 1
      %v359 = vsel %vm347, %v357, %v358
      %v360 = vrot.slane %v181, 1
      %v361 = vrot.slane %v182, 1
      %v362 = vsel %vm347, %v360, %v361
      %v363 = vrot.slane %v183, 1
      %v364 = vrot.slane %v184, 1
      %v365 = vsel %vm347, %v363, %v364
      %v366 = vrot.slane %v185, 1
      %v367 = vrot.slane %v186, 1
      %v368 = vsel %vm347, %v366, %v367
      %v369 = vrot.slane %v187, 1
      %v370 = vrot.slane %v188, 1
      %v371 = vsel %vm347, %v369, %v370
      %v380 = vpack.c.bf16 %v353, %v350
      %v381 = vpack.c.bf16 %v359, %v356
      %v382 = vpack.c.bf16 %v365, %v362
      %v383 = vpack.c.bf16 %v371, %v368
      %v385 = vsel %vm241, %v380, 0
      %v388 = vsel %vm241, %v381, 0
      %v391 = vsel %vm241, %v382, 0
      %v394 = vsel %vm241, %v383, 0
      %v397 = vsel %vm254, %v226, 0
      %399 = vmatpush.bf16.msra.mxu0 0
      %400 = vmatpush.bf16.msra.mxu0 0
      %401 = vmatpush.bf16.msra.mxu0 0
      %402 = vmatpush.bf16.msra.mxu0 0
      %403 = vmatpush.bf16.msra.mxu0 0
      %404 = vmatpush.bf16.msra.mxu0 0
      %405 = vmatpush.bf16.msra.mxu0 0
      %406 = vmatpush.bf16.msra.mxu0 %v397
      %407 = vmatmul.bf16.gmra.mxu0 %v385
      %v408 = vpop.f32.mrf.mxu0
      %v409 = vadd.f32 0.0, %v408
      %v410 = vpop.f32.mrf.mxu0
      %v411 = vadd.f32 0.0, %v410
      %412 = vmatmul.bf16.gmra.mxu0 %v388
      %v413 = vpop.f32.mrf.mxu0
      %v414 = vadd.f32 0.0, %v413
      %v415 = vpop.f32.mrf.mxu0
      %v416 = vadd.f32 0.0, %v415
      %417 = vmatmul.bf16.gmra.mxu0 %v391
      %v418 = vpop.f32.mrf.mxu0
      %v419 = vadd.f32 0.0, %v418
      %v420 = vpop.f32.mrf.mxu0
      %v421 = vadd.f32 0.0, %v420
      %422 = vmatmul.bf16.gmra.mxu0 %v394
      %v423 = vpop.f32.mrf.mxu0
      %v424 = vadd.f32 0.0, %v423
      %v425 = vpop.f32.mrf.mxu0
      %v426 = vadd.f32 0.0, %v425
      %427 = vdwg.mxu0
      %v428 = vadd.f32 %v312, %v409
      %v429 = vadd.f32 %v314, %v411
      %v430 = vadd.f32 %v317, %v414
      %v431 = vadd.f32 %v319, %v416
      %v432 = vadd.f32 %v322, %v419
      %v433 = vadd.f32 %v324, %v421
      %v434 = vadd.f32 %v327, %v424
      %v435 = vadd.f32 %v329, %v426
      %v436 = vpack.c.bf16 %v202, %v200
      %v437 = vpack.c.bf16 %v206, %v204
      %v438 = vpack.c.bf16 %v210, %v208
      %v439 = vpack.c.bf16 %v214, %v212
      %v441 = vsel %vm241, %v436, 0
      %v444 = vsel %vm241, %v437, 0
      %v447 = vsel %vm241, %v438, 0
      %v450 = vsel %vm241, %v439, 0
      %v453 = vsel %vm254, %v227, 0
      %455 = vmatpush.bf16.msra.mxu0 0
      %456 = vmatpush.bf16.msra.mxu0 0
      %457 = vmatpush.bf16.msra.mxu0 0
      %458 = vmatpush.bf16.msra.mxu0 0
      %459 = vmatpush.bf16.msra.mxu0 0
      %460 = vmatpush.bf16.msra.mxu0 0
      %461 = vmatpush.bf16.msra.mxu0 0
      %462 = vmatpush.bf16.msra.mxu0 %v453
      %463 = vmatmul.bf16.gmra.mxu0 %v441
      %v464 = vpop.f32.mrf.mxu0
      %v465 = vadd.f32 0.0, %v464
      %v466 = vpop.f32.mrf.mxu0
      %v467 = vadd.f32 0.0, %v466
      %468 = vmatmul.bf16.gmra.mxu0 %v444
      %v469 = vpop.f32.mrf.mxu0
      %v470 = vadd.f32 0.0, %v469
      %v471 = vpop.f32.mrf.mxu0
      %v472 = vadd.f32 0.0, %v471
      %473 = vmatmul.bf16.gmra.mxu0 %v447
      %v474 = vpop.f32.mrf.mxu0
      %v475 = vadd.f32 0.0, %v474
      %v476 = vpop.f32.mrf.mxu0
      %v477 = vadd.f32 0.0, %v476
      %478 = vmatmul.bf16.gmra.mxu0 %v450
      %v479 = vpop.f32.mrf.mxu0
      %v480 = vadd.f32 0.0, %v479
      %v481 = vpop.f32.mrf.mxu0
      %v482 = vadd.f32 0.0, %v481
      %483 = vdwg.mxu0
      %v484 = vadd.f32 %v428, %v465
      %v485 = vadd.f32 %v429, %v467
      %v486 = vadd.f32 %v430, %v470
      %v487 = vadd.f32 %v431, %v472
      %v488 = vadd.f32 %v432, %v475
      %v489 = vadd.f32 %v433, %v477
      %v490 = vadd.f32 %v434, %v480
      %v491 = vadd.f32 %v435, %v482
      %v492 = vpack.c.bf16 %v217, %v216
      %v493 = vpack.c.bf16 %v219, %v218
      %v494 = vpack.c.bf16 %v221, %v220
      %v495 = vpack.c.bf16 %v223, %v222
      %v497 = vsel %vm241, %v492, 0
      %v500 = vsel %vm241, %v493, 0
      %v503 = vsel %vm241, %v494, 0
      %v506 = vsel %vm241, %v495, 0
      %v509 = vsel %vm254, %v228, 0
      %511 = vmatpush.bf16.msra.mxu0 0
      %512 = vmatpush.bf16.msra.mxu0 0
      %513 = vmatpush.bf16.msra.mxu0 0
      %514 = vmatpush.bf16.msra.mxu0 0
      %515 = vmatpush.bf16.msra.mxu0 0
      %516 = vmatpush.bf16.msra.mxu0 0
      %517 = vmatpush.bf16.msra.mxu0 0
      %518 = vmatpush.bf16.msra.mxu0 %v509
      %519 = vmatmul.bf16.gmra.mxu0 %v497
      %v520 = vpop.f32.mrf.mxu0
      %v521 = vadd.f32 0.0, %v520
      %v522 = vpop.f32.mrf.mxu0
      %v523 = vadd.f32 0.0, %v522
      %524 = vmatmul.bf16.gmra.mxu0 %v500
      %v525 = vpop.f32.mrf.mxu0
      %v526 = vadd.f32 0.0, %v525
      %v527 = vpop.f32.mrf.mxu0
      %v528 = vadd.f32 0.0, %v527
      %529 = vmatmul.bf16.gmra.mxu0 %v503
      %v530 = vpop.f32.mrf.mxu0
      %v531 = vadd.f32 0.0, %v530
      %v532 = vpop.f32.mrf.mxu0
      %v533 = vadd.f32 0.0, %v532
      %534 = vmatmul.bf16.gmra.mxu0 %v506
      %v535 = vpop.f32.mrf.mxu0
      %v536 = vadd.f32 0.0, %v535
      %v537 = vpop.f32.mrf.mxu0
      %v538 = vadd.f32 0.0, %v537
      %539 = vdwg.mxu0
      %v540 = vadd.f32 %v484, %v521
      %v541 = vadd.f32 %v485, %v523
      %v542 = vadd.f32 %v486, %v526
      %v543 = vadd.f32 %v487, %v528
      %v544 = vadd.f32 %v488, %v531
      %v545 = vadd.f32 %v489, %v533
      %v546 = vadd.f32 %v490, %v536
      %v547 = vadd.f32 %v491, %v538
      %v564 = vrot.slane %v200, 1
      %v565 = vrot.slane %v201, 1
      %v566 = vsel %vm347, %v564, %v565
      %v567 = vrot.slane %v202, 1
      %v568 = vrot.slane %v203, 1
      %v569 = vsel %vm347, %v567, %v568
      %v570 = vrot.slane %v204, 1
      %v571 = vrot.slane %v205, 1
      %v572 = vsel %vm347, %v570, %v571
      %v573 = vrot.slane %v206, 1
      %v574 = vrot.slane %v207, 1
      %v575 = vsel %vm347, %v573, %v574
      %v576 = vrot.slane %v208, 1
      %v577 = vrot.slane %v209, 1
      %v578 = vsel %vm347, %v576, %v577
      %v579 = vrot.slane %v210, 1
      %v580 = vrot.slane %v211, 1
      %v581 = vsel %vm347, %v579, %v580
      %v582 = vrot.slane %v212, 1
      %v583 = vrot.slane %v213, 1
      %v584 = vsel %vm347, %v582, %v583
      %v585 = vrot.slane %v214, 1
      %v586 = vrot.slane %v215, 1
      %v587 = vsel %vm347, %v585, %v586
      %v596 = vpack.c.bf16 %v569, %v566
      %v597 = vpack.c.bf16 %v575, %v572
      %v598 = vpack.c.bf16 %v581, %v578
      %v599 = vpack.c.bf16 %v587, %v584
      %v601 = vsel %vm241, %v596, 0
      %v604 = vsel %vm241, %v597, 0
      %v607 = vsel %vm241, %v598, 0
      %v610 = vsel %vm241, %v599, 0
      %v613 = vsel %vm254, %v229, 0
      %615 = vmatpush.bf16.msra.mxu0 0
      %616 = vmatpush.bf16.msra.mxu0 0
      %617 = vmatpush.bf16.msra.mxu0 0
      %618 = vmatpush.bf16.msra.mxu0 0
      %619 = vmatpush.bf16.msra.mxu0 0
      %620 = vmatpush.bf16.msra.mxu0 0
      %621 = vmatpush.bf16.msra.mxu0 0
      %622 = vmatpush.bf16.msra.mxu0 %v613
      %623 = vmatmul.bf16.gmra.mxu0 %v601
      %v624 = vpop.f32.mrf.mxu0
      %v625 = vadd.f32 0.0, %v624
      %v626 = vpop.f32.mrf.mxu0
      %v627 = vadd.f32 0.0, %v626
      %628 = vmatmul.bf16.gmra.mxu0 %v604
      %v629 = vpop.f32.mrf.mxu0
      %v630 = vadd.f32 0.0, %v629
      %v631 = vpop.f32.mrf.mxu0
      %v632 = vadd.f32 0.0, %v631
      %633 = vmatmul.bf16.gmra.mxu0 %v607
      %v634 = vpop.f32.mrf.mxu0
      %v635 = vadd.f32 0.0, %v634
      %v636 = vpop.f32.mrf.mxu0
      %v637 = vadd.f32 0.0, %v636
      %638 = vmatmul.bf16.gmra.mxu0 %v610
      %v639 = vpop.f32.mrf.mxu0
      %v640 = vadd.f32 0.0, %v639
      %v641 = vpop.f32.mrf.mxu0
      %v642 = vadd.f32 0.0, %v641
      %643 = vdwg.mxu0
      %v644 = vadd.f32 %v540, %v625
      %v645 = vadd.f32 %v541, %v627
      %v646 = vadd.f32 %v542, %v630
      %v647 = vadd.f32 %v543, %v632
      %v648 = vadd.f32 %v544, %v635
      %v649 = vadd.f32 %v545, %v637
      %v650 = vadd.f32 %v546, %v640
      %v651 = vadd.f32 %v547, %v642
      %v652 = vpack.c.bf16 %v177, %v175
      %v653 = vpack.c.bf16 %v181, %v179
      %v654 = vpack.c.bf16 %v185, %v183
      %v655 = vpack.c.bf16 %v189, %v187
      %v657 = vsel %vm241, %v652, 0
      %v660 = vsel %vm241, %v653, 0
      %v663 = vsel %vm241, %v654, 0
      %v666 = vsel %vm241, %v655, 0
      %v669 = vsel %vm254, %v230, 0
      %671 = vmatpush.bf16.msra.mxu0 0
      %672 = vmatpush.bf16.msra.mxu0 0
      %673 = vmatpush.bf16.msra.mxu0 0
      %674 = vmatpush.bf16.msra.mxu0 0
      %675 = vmatpush.bf16.msra.mxu0 0
      %676 = vmatpush.bf16.msra.mxu0 0
      %677 = vmatpush.bf16.msra.mxu0 0
      %678 = vmatpush.bf16.msra.mxu0 %v669
      %679 = vmatmul.bf16.gmra.mxu0 %v657
      %v680 = vpop.f32.mrf.mxu0
      %v681 = vadd.f32 0.0, %v680
      %v682 = vpop.f32.mrf.mxu0
      %v683 = vadd.f32 0.0, %v682
      %684 = vmatmul.bf16.gmra.mxu0 %v660
      %v685 = vpop.f32.mrf.mxu0
      %v686 = vadd.f32 0.0, %v685
      %v687 = vpop.f32.mrf.mxu0
      %v688 = vadd.f32 0.0, %v687
      %689 = vmatmul.bf16.gmra.mxu0 %v663
      %v690 = vpop.f32.mrf.mxu0
      %v691 = vadd.f32 0.0, %v690
      %v692 = vpop.f32.mrf.mxu0
      %v693 = vadd.f32 0.0, %v692
      %694 = vmatmul.bf16.gmra.mxu0 %v666
      %v695 = vpop.f32.mrf.mxu0
      %v696 = vadd.f32 0.0, %v695
      %v697 = vpop.f32.mrf.mxu0
      %v698 = vadd.f32 0.0, %v697
      %699 = vdwg.mxu0
      %v700 = vadd.f32 %v644, %v681
      %v701 = vadd.f32 %v645, %v683
      %v702 = vadd.f32 %v646, %v686
      %v703 = vadd.f32 %v647, %v688
      %v704 = vadd.f32 %v648, %v691
      %v705 = vadd.f32 %v649, %v693
      %v706 = vadd.f32 %v650, %v696
      %v707 = vadd.f32 %v651, %v698
      %v708 = vpack.c.bf16 %v193, %v192
      %v709 = vpack.c.bf16 %v195, %v194
      %v710 = vpack.c.bf16 %v197, %v196
      %v711 = vpack.c.bf16 %v199, %v198
      %v713 = vsel %vm241, %v708, 0
      %v716 = vsel %vm241, %v709, 0
      %v719 = vsel %vm241, %v710, 0
      %v722 = vsel %vm241, %v711, 0
      %v725 = vsel %vm254, %v231, 0
      %727 = vmatpush.bf16.msra.mxu0 0
      %728 = vmatpush.bf16.msra.mxu0 0
      %729 = vmatpush.bf16.msra.mxu0 0
      %730 = vmatpush.bf16.msra.mxu0 0
      %731 = vmatpush.bf16.msra.mxu0 0
      %732 = vmatpush.bf16.msra.mxu0 0
      %733 = vmatpush.bf16.msra.mxu0 0
      %734 = vmatpush.bf16.msra.mxu0 %v725
      %735 = vmatmul.bf16.gmra.mxu0 %v713
      %v736 = vpop.f32.mrf.mxu0
      %v737 = vadd.f32 0.0, %v736
      %v738 = vpop.f32.mrf.mxu0
      %v739 = vadd.f32 0.0, %v738
      %740 = vmatmul.bf16.gmra.mxu0 %v716
      %v741 = vpop.f32.mrf.mxu0
      %v742 = vadd.f32 0.0, %v741
      %v743 = vpop.f32.mrf.mxu0
      %v744 = vadd.f32 0.0, %v743
      %745 = vmatmul.bf16.gmra.mxu0 %v719
      %v746 = vpop.f32.mrf.mxu0
      %v747 = vadd.f32 0.0, %v746
      %v748 = vpop.f32.mrf.mxu0
      %v749 = vadd.f32 0.0, %v748
      %750 = vmatmul.bf16.gmra.mxu0 %v722
      %v751 = vpop.f32.mrf.mxu0
      %v752 = vadd.f32 0.0, %v751
      %v753 = vpop.f32.mrf.mxu0
      %v754 = vadd.f32 0.0, %v753
      %755 = vdwg.mxu0
      %v756 = vadd.f32 %v700, %v737
      %v757 = vadd.f32 %v701, %v739
      %v758 = vadd.f32 %v702, %v742
      %v759 = vadd.f32 %v703, %v744
      %v760 = vadd.f32 %v704, %v747
      %v761 = vadd.f32 %v705, %v749
      %v762 = vadd.f32 %v706, %v752
      %v763 = vadd.f32 %v707, %v754
      %v766 = vrot.slane %v189, 1
      %v767 = vrot.slane %v190, 1
      %v768 = vsel %vm347, %v766, %v767
      %v770 = vpack.c.bf16 %v356, %v353
      %v771 = vpack.c.bf16 %v362, %v359
      %v772 = vpack.c.bf16 %v368, %v365
      %v773 = vpack.c.bf16 %v768, %v371
      %v775 = vsel %vm241, %v770, 0
      %v778 = vsel %vm241, %v771, 0
      %v781 = vsel %vm241, %v772, 0
      %v784 = vsel %vm241, %v773, 0
      %v787 = vsel %vm254, %v232, 0
      %789 = vmatpush.bf16.msra.mxu0 0
      %790 = vmatpush.bf16.msra.mxu0 0
      %791 = vmatpush.bf16.msra.mxu0 0
      %792 = vmatpush.bf16.msra.mxu0 0
      %793 = vmatpush.bf16.msra.mxu0 0
      %794 = vmatpush.bf16.msra.mxu0 0
      %795 = vmatpush.bf16.msra.mxu0 0
      %796 = vmatpush.bf16.msra.mxu0 %v787
      %797 = vmatmul.bf16.gmra.mxu0 %v775
      %v798 = vpop.f32.mrf.mxu0
      %v799 = vadd.f32 0.0, %v798
      %v800 = vpop.f32.mrf.mxu0
      %v801 = vadd.f32 0.0, %v800
      %802 = vmatmul.bf16.gmra.mxu0 %v778
      %v803 = vpop.f32.mrf.mxu0
      %v804 = vadd.f32 0.0, %v803
      %v805 = vpop.f32.mrf.mxu0
      %v806 = vadd.f32 0.0, %v805
      %807 = vmatmul.bf16.gmra.mxu0 %v781
      %v808 = vpop.f32.mrf.mxu0
      %v809 = vadd.f32 0.0, %v808
      %v810 = vpop.f32.mrf.mxu0
      %v811 = vadd.f32 0.0, %v810
      %812 = vmatmul.bf16.gmra.mxu0 %v784
      %v813 = vpop.f32.mrf.mxu0
      %v814 = vadd.f32 0.0, %v813
      %v815 = vpop.f32.mrf.mxu0
      %v816 = vadd.f32 0.0, %v815
      %817 = vdwg.mxu0
      %v818 = vadd.f32 %v756, %v799
      %v819 = vadd.f32 %v757, %v801
      %v820 = vadd.f32 %v758, %v804
      %v821 = vadd.f32 %v759, %v806
      %v822 = vadd.f32 %v760, %v809
      %v823 = vadd.f32 %v761, %v811
      %v824 = vadd.f32 %v762, %v814
      %v825 = vadd.f32 %v763, %v816
      %v826 = vld [vmem:[%s2] sm:$0x1]
      %v828 = vperm.slane %v826, 0
      %v830 = vadd.f32 %v818, %v828
      %v831 = vadd.f32 %v819, %v828
      %v832 = vadd.f32 %v820, %v828
      %v833 = vadd.f32 %v821, %v828
      %v834 = vadd.f32 %v822, %v828
      %v835 = vadd.f32 %v823, %v828
      %v836 = vadd.f32 %v824, %v828
      %v837 = vadd.f32 %v825, %v828
      %838 = vst [vmem:[%s170] sm:$0xff] %v830
      %839 = vst [vmem:[%s170 + $0x8] sm:$0xff] %v831
      %840 = vst [vmem:[%s170 + $0x10] sm:$0xff] %v832
      %841 = vst [vmem:[%s170 + $0x18] sm:$0xff] %v833
      %842 = vst [vmem:[%s170 + $0x20] sm:$0xff] %v834
      %843 = vst [vmem:[%s170 + $0x28] sm:$0xff] %v835
      %844 = vst [vmem:[%s170 + $0x30] sm:$0xff] %v836
      %845 = vst [vmem:[%s170 + $0x38] sm:$0xff] %v837
      %s846 = smul.u32 8, %s14
      %p847 = scmp.lt.s32.totalorder %s846, 15
      %s848 = scalar_select %p847, %s846, 15
      %s849 = smul.addr %s848, 8
      %s850 = scalar_lea.vmem %s3, %s849
      // Predicated region
      $region33: #{_lambda_.3} parent=31 // pred_check
        %p851 = pneg %p100
      $region34: #{_lambda_.3} parent=31 // pred_check_branch
        %853 = sbr.rel (%p851) target = $region36
      $region35: #{_lambda_.3} parent=31 // pred_region
        %s854 = smul.u32 8, %s14
      $region36: #{_lambda_.3} parent=31 // pred_fallthru
        _
    $region32: #{_lambda_.3} parent=5 // pred_fallthru
      _
    %p855 = scmp.le.s32.totalorder 2, %s9
    // Predicated region
    $region37: #{_lambda_.3} parent=5 // pred_check
      %p856 = pneg %p855
    $region38: #{_lambda_.3} parent=5 // pred_check_branch
      %858 = sbr.rel (%p856) target = $region40
    $region39: #{_lambda_.3} parent=5 // pred_region
      %s859 = ssub.s32 %s9, 2
      // Predicated region
      $region41: #{_lambda_.3} parent=39 // pred_check
        %p860 = pneg %p106
      $region42: #{_lambda_.3} parent=39 // pred_check_branch
        %862 = sbr.rel (%p860) target = $region44
      $region43: #{_lambda_.3} parent=39 // pred_region
        %s863 = smul.u32 8, %s15
        %p864 = scmp.lt.s32.totalorder %s863, 15
        %s865 = scalar_select %p864, %s863, 15
        %s866 = smul.addr %s865, 8
        %s867 = scalar_lea.vmem %s3, %s866
      $region44: #{_lambda_.3} parent=39 // pred_fallthru
        _
    $region40: #{_lambda_.3} parent=5 // pred_fallthru
      _
  $region6: #{_lambda_.3} parent=0 // loop_footer
    %s13 = sadd.s32 1, %s9
  $region7: #{_lambda_.3} parent=0 // loop_footer_branch
    %8 = sbr.rel target = $region3
  $region8: #{_lambda_.3} parent=0 // loop_exit
    _

</llo_original>
